<compile_context>
chip_gen: v5e
topology: v5e:2x2
jax: 0.10.0
libtpu: 0.0.40
codegen_flags: <defaults>
</compile_context>

<pallas_src>
import functools

import jax
import jax.numpy as jnp
from jax import lax
from jax.experimental import pallas as pl
from jax.experimental.pallas import tpu as pltpu


def _round_up(x: int, m: int) -> int:
    return ((x + m - 1) // m) * m


def _cnn_kernel(x_ref, w_ref, b_ref, o_ref, *, L_out: int, L_pad: int, k: int):
    # x_ref: (TB, m_pad, E) bf16   w_ref: (k*E, F_pad) bf16
    # b_ref: (1, F_pad) f32        o_ref: (TB, F_pad) f32
    TB, _m_pad, E = x_ref.shape
    F_pad = o_ref.shape[-1]

    x = x_ref[...]                                        # (TB, m_pad, E)

    # In-VMEM im2col over the tap axis: A[b, t, j*E + e] = x[b, t + j, e].
    taps = [x[:, j:j + L_pad, :] for j in range(k)]       # k x (TB, L_pad, E)
    a = jnp.concatenate(taps, axis=-1)                    # (TB, L_pad, k*E)
    a2 = a.reshape(TB * L_pad, k * E)                     # layout-free: L_pad % 16 == 0

    # Single MXU matmul per grid step: conv[b, t, f] = A[b, t, :] @ Wmat[:, f].
    y = jnp.dot(a2, w_ref[...], preferred_element_type=jnp.float32)
    y = y.reshape(TB, L_pad, F_pad)                       # (TB, L_pad, F_pad) f32

    # Mask padded conv positions, max-pool over the full conv length, then bias + ReLU
    # (bias is constant over the pooled axis, so relu/max/bias commute).
    valid = lax.broadcasted_iota(jnp.int32, (L_pad, F_pad), 0) < L_out
    y = jnp.where(valid[None, :, :], y, -jnp.inf)
    m = jnp.max(y, axis=1)                                # (TB, F_pad)
    o_ref[...] = jnp.maximum(m + b_ref[...], 0.0)


@functools.partial(jax.jit, static_argnames=("block_b",))
def cnn_forward_pallas(x_ncw, weight_oik, bias_o, *, block_b: int = 256):
    """x_ncw: (B, E, m_word); weight_oik: (F, E, k); bias_o: (F,) -> (B, F) f32."""
    B, E, m_word = x_ncw.shape
    F_out, E_w, k = weight_oik.shape
    assert E_w == E
    L_out = m_word - k + 1
    assert L_out >= 1

    # Padded, TPU-friendly shapes (bf16 inputs -> 16-row sublane packing).
    L_pad = _round_up(L_out, 16)                 # conv-length rows inside the kernel
    m_pad = _round_up(L_pad + k - 1, 16)         # so every tap slice stays in bounds
    F_pad = _round_up(max(F_out, 128), 128)      # lane-dense matmul N / output store

    # Batch tiling: at least 2 grid steps, even tile count (v7x has 2 TCs on the
    # "parallel" axis), tile rows a multiple of 8.
    num_tiles = _round_up(max(2, -(-B // max(block_b, 8))), 2)
    tb = _round_up(-(-B // num_tiles), 8)
    B_pad = tb * num_tiles

    # --- glue (cheap; fused under jit): channels-last bf16 x, flattened bf16 W ---
    x_lme = jnp.transpose(x_ncw, (0, 2, 1)).astype(jnp.bfloat16)        # (B, m_word, E)
    x_lme = jnp.pad(x_lme, ((0, B_pad - B), (0, m_pad - m_word), (0, 0)))

    # Wmat[j*E + e, f] = weight[f, e, j]  (matches the kernel's im2col ordering)
    w_mat = jnp.transpose(weight_oik, (2, 1, 0)).reshape(k * E, F_out)
    w_mat = jnp.pad(w_mat, ((0, 0), (0, F_pad - F_out))).astype(jnp.bfloat16)
    b2d = jnp.pad(bias_o.reshape(1, F_out).astype(jnp.float32),
                  ((0, 0), (0, F_pad - F_out)))                         # (1, F_pad)

    grid = (num_tiles,)
    flops = 2 * B * L_out * (k * E) * F_out
    bytes_accessed = (x_lme.size * 2 + w_mat.size * 2 + b2d.size * 4
                      + B_pad * F_pad * 4)

    out = pl.pallas_call(
        functools.partial(_cnn_kernel, L_out=L_out, L_pad=L_pad, k=k),
        out_shape=jax.ShapeDtypeStruct((B_pad, F_pad), jnp.float32),
        grid=grid,
        in_specs=[
            pl.BlockSpec((tb, m_pad, E), lambda i: (i, 0, 0)),   # streamed batch tile
            pl.BlockSpec((k * E, F_pad), lambda i: (0, 0)),      # weights, resident
            pl.BlockSpec((1, F_pad), lambda i: (0, 0)),          # bias, resident
        ],
        out_specs=pl.BlockSpec((tb, F_pad), lambda i: (i, 0)),
        compiler_params=pltpu.CompilerParams(
            dimension_semantics=("parallel",),            # shard batch tiles across TCs
            vmem_limit_bytes=48 * 1024 * 1024,            # above v5e/v7x scoped defaults
        ),
        cost_estimate=pl.CostEstimate(
            flops=flops, transcendentals=0, bytes_accessed=bytes_accessed),
    )(x_lme, w_mat, b2d)

    return out[:B, :F_out]


def cnn_forward_reference(x_ncw, weight_oik, bias_o):
    """Pure-JAX f32 reference mirroring the PyTorch module (for validation)."""
    conv = lax.conv_general_dilated(
        x_ncw, weight_oik, window_strides=(1,), padding="VALID",
        dimension_numbers=("NCH", "OIH", "NCH"))
    conv = conv + bias_o[None, :, None]
    relu = jnp.maximum(conv, 0.0)
    return jnp.max(relu, axis=-1)    # maxpool over full conv length + squeeze(-1)


if __name__ == "__main__":
    # Small shapes consistent with the module defaults (B = batch * max_sentence_length).
    B = 48
    embed_size = 50   # char embedding size (module default)
    m_word = 21       # max word length (module default)
    k = 5             # kernel size (module default)
    f = 64            # number of filters (word embedding size)

    key = jax.random.PRNGKey(0)
    kx, kw, kb = jax.random.split(key, 3)

    # Deterministic parameter init (PyTorch Conv1d-style uniform bounds).
    bound = 1.0 / (embed_size * k) ** 0.5
    weight = jax.random.uniform(kw, (f, embed_size, k), jnp.float32, -bound, bound)
    bias = jax.random.uniform(kb, (f,), jnp.float32, -bound, bound)

    x = jax.random.normal(kx, (B, embed_size, m_word), jnp.float32)

    # block_b=16 -> 4 batch tiles (even), exercising the pipelined grid at small scale.
    out = cnn_forward_pallas(x, weight, bias, block_b=16)
    out = jax.block_until_ready(out)

    ref = cnn_forward_reference(x, weight, bias)
    assert out.shape == (B, f)
    # bf16 inputs with f32 accumulation -> slightly looser tolerance than pure f32.
    assert jnp.allclose(out, ref, atol=3e-2, rtol=3e-2), "mismatch vs reference"

    print("KERNEL_OK")
</pallas_src>

<mosaic_0001>
module attributes {stable_mosaic.version = 11 : i64} {
  func.func @_cnn_kernel(%arg0: i32, %arg1: memref<16x48x50xbf16, #tpu.memory_space<vmem>>, %arg2: memref<250x128xbf16, #tpu.memory_space<vmem>>, %arg3: memref<1x128xf32, #tpu.memory_space<vmem>>, %arg4: memref<16x128xf32, #tpu.memory_space<vmem>>) attributes {dimension_semantics = [#tpu.dimension_semantics<parallel>], iteration_bounds = array<i64: 4>, scalar_prefetch = 0 : i64, scratch_operands = 0 : i64, tpu.core_type = #tpu.core_type<tc>, window_params = [{transform_indices = @transform_0, window_bounds = array<i64: 16, 48, 50>}, {pipeline_mode = #tpu.pipeline_mode<synchronous>, transform_indices = @transform_1, window_bounds = array<i64: 250, 128>}, {pipeline_mode = #tpu.pipeline_mode<synchronous>, transform_indices = @transform_2, window_bounds = array<i64: 1, 128>}, {transform_indices = @transform_3, window_bounds = array<i64: 16, 128>}]} {
    %c0 = arith.constant 0 : index
    %c0_0 = arith.constant 0 : index
    %c0_1 = arith.constant 0 : index
    %0 = vector.load %arg1[%c0, %c0_0, %c0_1] : memref<16x48x50xbf16, #tpu.memory_space<vmem>>, vector<16x48x50xbf16>
    %1 = vector.extract_strided_slice %0 {offsets = [0, 0, 0], sizes = [16, 32, 50], strides = [1, 1, 1]} : vector<16x48x50xbf16> to vector<16x32x50xbf16>
    %2 = vector.extract_strided_slice %0 {offsets = [0, 1, 0], sizes = [16, 32, 50], strides = [1, 1, 1]} : vector<16x48x50xbf16> to vector<16x32x50xbf16>
    %3 = vector.extract_strided_slice %0 {offsets = [0, 2, 0], sizes = [16, 32, 50], strides = [1, 1, 1]} : vector<16x48x50xbf16> to vector<16x32x50xbf16>
    %4 = vector.extract_strided_slice %0 {offsets = [0, 3, 0], sizes = [16, 32, 50], strides = [1, 1, 1]} : vector<16x48x50xbf16> to vector<16x32x50xbf16>
    %5 = vector.extract_strided_slice %0 {offsets = [0, 4, 0], sizes = [16, 32, 50], strides = [1, 1, 1]} : vector<16x48x50xbf16> to vector<16x32x50xbf16>
    %6 = tpu.concatenate %1, %2, %3, %4, %5 in 2 : vector<16x32x50xbf16>, vector<16x32x50xbf16>, vector<16x32x50xbf16>, vector<16x32x50xbf16>, vector<16x32x50xbf16> -> vector<16x32x250xbf16>
    %7 = vector.shape_cast %6 : vector<16x32x250xbf16> to vector<512x250xbf16>
    %c0_2 = arith.constant 0 : index
    %c0_3 = arith.constant 0 : index
    %8 = vector.load %arg2[%c0_2, %c0_3] : memref<250x128xbf16, #tpu.memory_space<vmem>>, vector<250x128xbf16>
    %cst = arith.constant dense<0.000000e+00> : vector<512x128xf32>
    %9 = tpu.matmul %7, %8, %cst {dimension_numbers = #tpu.dot_dimension_numbers<[1], [0], [0], [1], [0, 0, 1, 1], [], []>} : vector<512x250xbf16>, vector<250x128xbf16>, vector<512x128xf32> -> vector<512x128xf32>
    %10 = vector.shape_cast %9 : vector<512x128xf32> to vector<16x32x128xf32>
    %11 = tpu.iota {dimensions = array<i32: 0>} : vector<32x128xi32>
    %c17_i32 = arith.constant 17 : i32
    %12 = vector.broadcast %c17_i32 : i32 to vector<32x128xi32>
    %13 = arith.cmpi slt, %11, %12 : vector<32x128xi32>
    %14 = vector.shape_cast %13 : vector<32x128xi1> to vector<1x32x128xi1>
    %cst_4 = arith.constant 0xFF800000 : f32
    %15 = vector.shape_cast %14 : vector<1x32x128xi1> to vector<1x32x128xi1>
    %16 = vector.broadcast %15 : vector<1x32x128xi1> to vector<16x32x128xi1>
    %17 = vector.broadcast %cst_4 : f32 to vector<16x32x128xf32>
    %18 = arith.select %16, %10, %17 : vector<16x32x128xi1>, vector<16x32x128xf32>
    %cst_5 = arith.constant dense<0xFF800000> : vector<16x128xf32>
    %19 = vector.multi_reduction <maximumf>, %18, %cst_5 [1] : vector<16x32x128xf32> to vector<16x128xf32>
    %c0_6 = arith.constant 0 : index
    %c0_7 = arith.constant 0 : index
    %20 = vector.load %arg3[%c0_6, %c0_7] : memref<1x128xf32, #tpu.memory_space<vmem>>, vector<1x128xf32>
    %21 = vector.broadcast %20 : vector<1x128xf32> to vector<16x128xf32>
    %22 = arith.addf %19, %21 : vector<16x128xf32>
    %cst_8 = arith.constant 0.000000e+00 : f32
    %23 = vector.broadcast %cst_8 : f32 to vector<16x128xf32>
    %24 = arith.maximumf %22, %23 : vector<16x128xf32>
    %c0_9 = arith.constant 0 : index
    %c0_10 = arith.constant 0 : index
    %25 = vector.load %arg4[%c0_9, %c0_10] : memref<16x128xf32, #tpu.memory_space<vmem>>, vector<16x128xf32>
    tpu.vector_store %arg4[%c0_9, %c0_10], %24 {strides = array<i32>} : memref<16x128xf32, #tpu.memory_space<vmem>>, vector<16x128xf32>,
    return
  }
  func.func @transform_0(%arg0: i32) -> (i32, i32, i32) {
    %c0_i32 = arith.constant 0 : i32
    %c0_i32_0 = arith.constant 0 : i32
    %c0_i32_1 = arith.constant 0 : i32
    return %arg0, %c0_i32, %c0_i32_0 : i32, i32, i32
  }
  func.func @transform_1(%arg0: i32) -> (i32, i32) {
    %c0_i32 = arith.constant 0 : i32
    %c0_i32_0 = arith.constant 0 : i32
    %c0_i32_1 = arith.constant 0 : i32
    return %c0_i32, %c0_i32_0 : i32, i32
  }
  func.func @transform_2(%arg0: i32) -> (i32, i32) {
    %c0_i32 = arith.constant 0 : i32
    %c0_i32_0 = arith.constant 0 : i32
    %c0_i32_1 = arith.constant 0 : i32
    return %c0_i32, %c0_i32_0 : i32, i32
  }
  func.func @transform_3(%arg0: i32) -> (i32, i32) {
    %c0_i32 = arith.constant 0 : i32
    %c0_i32_0 = arith.constant 0 : i32
    return %arg0, %c0_i32 : i32, i32
  }
}

</mosaic_0001>

<llo_original>
// kernel: cnn_forward_pallas.1
$region0: #{cnn_forward_pallas.1}
  #allocation0 [shape = 'u32[]', space=smem, size = 0x4, offset = 0x4, fixed_abs, tag = 'smem constant byte address 0x4 - core index']
  #allocation1 [shape = 'u32[72,128]{1,0:T(1,128)}', space=vmem, size = 0x9000, scoped, tag = 'internal scratch']
  %s0 = inlined_call_operand.vmem [shape: bf16[64,48,50], index: 0, kind: input, shape index: {}]
  %s1 = inlined_call_operand.vmem [shape: bf16[250,128], index: 1, kind: input, shape index: {}]
  %s2 = inlined_call_operand.vmem [shape: f32[1,128], index: 2, kind: input, shape index: {}]
  %s3 = inlined_call_operand.vmem [shape: f32[64,128], index: 3, kind: output, shape index: {}]
  %s4 = sld [smem:[#allocation0]]
  $region45: #{cnn_forward_pallas.1} parent=0
    _
  %s6 = ssub.s32 1, %s4
  %s7 = scalar_select 0, %s6, %s4
  loop: start=0, step=1, limit=6
  $region2: #{cnn_forward_pallas.1} parent=0 // loop_pre_header
    _
  $region3: #{cnn_forward_pallas.1} parent=0 // loop_header
    %s9 = sphi 0, %s13
    %p10 = scmp.ge.s32.totalorder %s9, 6
    %s19 = sphi 0, %s21
    %s22 = sphi 0, %s19
    %s23 = sphi 0, %s22
    %s39 = sphi 0, %s23
    %s43 = sphi 0, %s43
    %s45 = sphi 0, %s43
    %s46 = sphi 0, %s45
    %s60 = sphi 0, %s46
    %s64 = sphi 0, %s64
    %s66 = sphi 0, %s64
    %s67 = sphi 0, %s66
    %s81 = sphi 0, %s67
    %s87 = sphi 0, %s89
    %s90 = sphi 0, %s87
    %s91 = sphi 0, %s90
    %s107 = sphi 0, %s91
  $region4: #{cnn_forward_pallas.1} parent=0 // loop_header_branch
    %12 = sbr.rel (%p10) target = $region8
  $region5: #{cnn_forward_pallas.1} parent=0 // loop_body
    %s14 = ssub.s32 %s9, 1
    %s15 = ssub.s32 %s9, 2
    %s16 = sadd.s32 %s9, 1
    %s17 = ssub.s32 %s9, %s16
    %p18 = scmp.eq.s32.totalorder %s17, 0
    %s20 = sadd.s32 %s19, 1
    %s21 = scalar_select %p18, %s19, %s20
    %p24 = pneg %p18
    %p25 = scmp.eq.s32.totalorder %s9, 3
    %p26 = por %p24, %p25
    %p27 = scmp.ne.s32.totalorder %s19, %s22
    %p28 = scmp.eq.s32.totalorder %s9, 0
    %p29 = por %p27, %p28
    %p30 = scmp.ne.s32.totalorder %s19, %s22
    %p31 = scmp.eq.s32.totalorder %s14, 3
    %p32 = por %p30, %p31
    %p33 = scmp.ne.s32.totalorder %s22, %s23
    %p34 = scmp.eq.s32.totalorder %s14, 0
    %p35 = por %p33, %p34
    %p36 = scmp.ne.s32.totalorder %s22, %s23
    %p37 = scmp.eq.s32.totalorder %s15, 3
    %p38 = por %p36, %p37
    %p40 = scmp.ne.s32.totalorder %s23, %s39
    %p41 = scmp.eq.s32.totalorder %s15, 0
    %p42 = por %p40, %p41
    %s44 = sadd.s32 %s43, 1
    %p47 = scmp.eq.s32.totalorder %s9, 3
    %p48 = scmp.ne.s32.totalorder %s43, %s45
    %p49 = scmp.eq.s32.totalorder %s9, 0
    %p50 = por %p48, %p49
    %p51 = scmp.ne.s32.totalorder %s43, %s45
    %p52 = scmp.eq.s32.totalorder %s14, 3
    %p53 = por %p51, %p52
    %p54 = scmp.ne.s32.totalorder %s45, %s46
    %p55 = scmp.eq.s32.totalorder %s14, 0
    %p56 = por %p54, %p55
    %p57 = scmp.ne.s32.totalorder %s45, %s46
    %p58 = scmp.eq.s32.totalorder %s15, 3
    %p59 = por %p57, %p58
    %p61 = scmp.ne.s32.totalorder %s46, %s60
    %p62 = scmp.eq.s32.totalorder %s15, 0
    %p63 = por %p61, %p62
    %s65 = sadd.s32 %s64, 1
    %p68 = scmp.eq.s32.totalorder %s9, 3
    %p69 = scmp.ne.s32.totalorder %s64, %s66
    %p70 = scmp.eq.s32.totalorder %s9, 0
    %p71 = por %p69, %p70
    %p72 = scmp.ne.s32.totalorder %s64, %s66
    %p73 = scmp.eq.s32.totalorder %s14, 3
    %p74 = por %p72, %p73
    %p75 = scmp.ne.s32.totalorder %s66, %s67
    %p76 = scmp.eq.s32.totalorder %s14, 0
    %p77 = por %p75, %p76
    %p78 = scmp.ne.s32.totalorder %s66, %s67
    %p79 = scmp.eq.s32.totalorder %s15, 3
    %p80 = por %p78, %p79
    %p82 = scmp.ne.s32.totalorder %s67, %s81
    %p83 = scmp.eq.s32.totalorder %s15, 0
    %p84 = por %p82, %p83
    %s85 = ssub.s32 %s9, %s16
    %p86 = scmp.eq.s32.totalorder %s85, 0
    %s88 = sadd.s32 %s87, 1
    %s89 = scalar_select %p86, %s87, %s88
    %p92 = pneg %p86
    %p93 = scmp.eq.s32.totalorder %s9, 3
    %p94 = por %p92, %p93
    %p95 = scmp.ne.s32.totalorder %s87, %s90
    %p96 = scmp.eq.s32.totalorder %s9, 0
    %p97 = por %p95, %p96
    %p98 = scmp.ne.s32.totalorder %s87, %s90
    %p99 = scmp.eq.s32.totalorder %s14, 3
    %p100 = por %p98, %p99
    %p101 = scmp.ne.s32.totalorder %s90, %s91
    %p102 = scmp.eq.s32.totalorder %s14, 0
    %p103 = por %p101, %p102
    %p104 = scmp.ne.s32.totalorder %s90, %s91
    %p105 = scmp.eq.s32.totalorder %s15, 3
    %p106 = por %p104, %p105
    %p108 = scmp.ne.s32.totalorder %s91, %s107
    %p109 = scmp.eq.s32.totalorder %s15, 0
    %p110 = por %p108, %p109
    %p111 = scmp.le.s32.totalorder 1, %s9
    %p112 = scmp.lt.s32.totalorder %s9, 5
    %p113 = pnand %p111, %p112
    %p114 = pneg %p113
    // Predicated region
    $region9: #{cnn_forward_pallas.1} parent=5 // pred_check
      _
    $region10: #{cnn_forward_pallas.1} parent=5 // pred_check_branch
      %116 = sbr.rel (%p113) target = $region12
    $region11: #{cnn_forward_pallas.1} parent=5 // pred_region
      %s117 = ssub.s32 %s9, 1
      // Predicated region
      $region13: #{cnn_forward_pallas.1} parent=11 // pred_check
        %p118 = pneg %p56
      $region14: #{cnn_forward_pallas.1} parent=11 // pred_check_branch
        %120 = sbr.rel (%p118) target = $region16
      $region15: #{cnn_forward_pallas.1} parent=11 // pred_region
        _
      $region16: #{cnn_forward_pallas.1} parent=11 // pred_fallthru
        _
      // Predicated region
      $region17: #{cnn_forward_pallas.1} parent=11 // pred_check
        %p121 = pneg %p77
      $region18: #{cnn_forward_pallas.1} parent=11 // pred_check_branch
        %123 = sbr.rel (%p121) target = $region20
      $region19: #{cnn_forward_pallas.1} parent=11 // pred_region
        _
      $region20: #{cnn_forward_pallas.1} parent=11 // pred_fallthru
        _
    $region12: #{cnn_forward_pallas.1} parent=5 // pred_fallthru
      _
    %p124 = scmp.lt.s32.totalorder %s9, 4
    // Predicated region
    $region21: #{cnn_forward_pallas.1} parent=5 // pred_check
      %p125 = pneg %p124
    $region22: #{cnn_forward_pallas.1} parent=5 // pred_check_branch
      %127 = sbr.rel (%p125) target = $region24
    $region23: #{cnn_forward_pallas.1} parent=5 // pred_region
      // Predicated region
      $region25: #{cnn_forward_pallas.1} parent=23 // pred_check
        %p128 = pneg %p29
      $region26: #{cnn_forward_pallas.1} parent=23 // pred_check_branch
        %130 = sbr.rel (%p128) target = $region28
      $region27: #{cnn_forward_pallas.1} parent=23 // pred_region
        %s131 = smul.u32 16, %s9
        %p132 = scmp.lt.s32.totalorder %s131, 63
        %s133 = scalar_select %p132, %s131, 63
        %s134 = smul.addr %s133, 6
        %s135 = smul.addr %s134, 4
        %s136 = scalar_lea.vmem %s0, %s135
        %s137 = smul.u32 16, %s9
      $region28: #{cnn_forward_pallas.1} parent=23 // pred_fallthru
        _
    $region24: #{cnn_forward_pallas.1} parent=5 // pred_fallthru
      _
    %p138 = scmp.le.s32.totalorder 1, %s9
    %p139 = scmp.lt.s32.totalorder %s9, 5
    %p140 = pnand %p138, %p139
    %p141 = pneg %p140
    // Predicated region
    $region29: #{cnn_forward_pallas.1} parent=5 // pred_check
      _
    $region30: #{cnn_forward_pallas.1} parent=5 // pred_check_branch
      %143 = sbr.rel (%p140) target = $region32
    $region31: #{cnn_forward_pallas.1} parent=5 // pred_region
      %s144 = ssub.s32 %s9, 1
      %s145 = smul.u32 16, %s14
      %p146 = scmp.lt.s32.totalorder %s145, 63
      %s147 = scalar_select %p146, %s145, 63
      %s148 = smul.addr %s147, 6
      %s149 = smul.addr %s148, 4
      %s150 = scalar_lea.vmem %s0, %s149
      %p151 = pneg %p35
      %p152 = pneg %p32
      %p153 = pneg %p56
      %p154 = pneg %p53
      %p155 = pneg %p77
      %p156 = pneg %p74
      %p157 = pneg %p103
      %p158 = pneg %p100
      %s159 = smul.u32 2, %s14
      %p160 = scmp.lt.s32.totalorder %s159, 7
      %s161 = scalar_select %p160, %s159, 7
      %s162 = smul.addr %s161, 8
      %s163 = scalar_lea.vmem %s3, %s162
      %s164 = smul.u32 16, %s14
      %p165 = scmp.lt.s32.totalorder %s164, 63
      %s166 = scalar_select %p165, %s164, 63
      %s167 = smul.addr %s166, 6
      %s168 = smul.addr %s167, 4
      %s169 = scalar_lea.vmem %s0, %s168
      %s170 = smul.u32 16, %s14
      %s171 = smul.u32 2, %s14
      %p172 = scmp.lt.s32.totalorder %s171, 7
      %s173 = scalar_select %p172, %s171, 7
      %s174 = smul.addr %s173, 8
      %s175 = scalar_lea.vmem %s3, %s174
      %s176 = smul.u32 2, %s14
      %v177 = vld [vmem:[%s169] sm:$0xf]
      %v178 = vld [vmem:[%s169 + $0x4] sm:$0xf]
      %v179 = vld [vmem:[%s169 + $0x8] sm:$0xf]
      %v180 = vld [vmem:[%s169 + $0xc] sm:$0xf]
      %v181 = vld [vmem:[%s169 + $0x10] sm:$0xf]
      %v182 = vld [vmem:[%s169 + $0x18] sm:$0xf]
      %v183 = vld [vmem:[%s169 + $0x1c] sm:$0xf]
      %v184 = vld [vmem:[%s169 + $0x20] sm:$0xf]
      %v185 = vld [vmem:[%s169 + $0x24] sm:$0xf]
      %v186 = vld [vmem:[%s169 + $0x28] sm:$0xf]
      %v187 = vld [vmem:[%s169 + $0x30] sm:$0xf]
      %v188 = vld [vmem:[%s169 + $0x34] sm:$0xf]
      %v189 = vld [vmem:[%s169 + $0x38] sm:$0xf]
      %v190 = vld [vmem:[%s169 + $0x3c] sm:$0xf]
      %v191 = vld [vmem:[%s169 + $0x40] sm:$0xf]
      %v192 = vld [vmem:[%s169 + $0x48] sm:$0xf]
      %v193 = vld [vmem:[%s169 + $0x4c] sm:$0xf]
      %v194 = vld [vmem:[%s169 + $0x50] sm:$0xf]
      %v195 = vld [vmem:[%s169 + $0x54] sm:$0xf]
      %v196 = vld [vmem:[%s169 + $0x58] sm:$0xf]
      %v197 = vld [vmem:[%s169 + $0x60] sm:$0xf]
      %v198 = vld [vmem:[%s169 + $0x64] sm:$0xf]
      %v199 = vld [vmem:[%s169 + $0x68] sm:$0xf]
      %v200 = vld [vmem:[%s169 + $0x6c] sm:$0xf]
      %v201 = vld [vmem:[%s169 + $0x70] sm:$0xf]
      %v202 = vld [vmem:[%s169 + $0x78] sm:$0xf]
      %v203 = vld [vmem:[%s169 + $0x7c] sm:$0xf]
      %v204 = vld [vmem:[%s169 + $0x80] sm:$0xf]
      %v205 = vld [vmem:[%s169 + $0x84] sm:$0xf]
      %v206 = vld [vmem:[%s169 + $0x88] sm:$0xf]
      %v207 = vld [vmem:[%s169 + $0x90] sm:$0xf]
      %v208 = vld [vmem:[%s169 + $0x94] sm:$0xf]
      %v209 = vld [vmem:[%s169 + $0x98] sm:$0xf]
      %v210 = vld [vmem:[%s169 + $0x9c] sm:$0xf]
      %v211 = vld [vmem:[%s169 + $0xa0] sm:$0xf]
      %v212 = vld [vmem:[%s169 + $0xa8] sm:$0xf]
      %v213 = vld [vmem:[%s169 + $0xac] sm:$0xf]
      %v214 = vld [vmem:[%s169 + $0xb0] sm:$0xf]
      %v215 = vld [vmem:[%s169 + $0xb4] sm:$0xf]
      %v216 = vld [vmem:[%s169 + $0xb8] sm:$0xf]
      %v217 = vld [vmem:[%s169 + $0xc0] sm:$0xf]
      %v218 = vld [vmem:[%s169 + $0xc4] sm:$0xf]
      %v219 = vld [vmem:[%s169 + $0xc8] sm:$0xf]
      %v220 = vld [vmem:[%s169 + $0xcc] sm:$0xf]
      %v221 = vld [vmem:[%s169 + $0xd0] sm:$0xf]
      %v222 = vld [vmem:[%s169 + $0xd8] sm:$0xf]
      %v223 = vld [vmem:[%s169 + $0xdc] sm:$0xf]
      %v224 = vld [vmem:[%s169 + $0xe0] sm:$0xf]
      %v225 = vld [vmem:[%s169 + $0xe4] sm:$0xf]
      %v226 = vld [vmem:[%s169 + $0xe8] sm:$0xf]
      %v227 = vld [vmem:[%s169 + $0xf0] sm:$0xf]
      %v228 = vld [vmem:[%s169 + $0xf4] sm:$0xf]
      %v229 = vld [vmem:[%s169 + $0xf8] sm:$0xf]
      %v230 = vld [vmem:[%s169 + $0xfc] sm:$0xf]
      %v231 = vld [vmem:[%s169 + $0x100] sm:$0xf]
      %v232 = vld [vmem:[%s169 + $0x108] sm:$0xf]
      %v233 = vld [vmem:[%s169 + $0x10c] sm:$0xf]
      %v234 = vld [vmem:[%s169 + $0x110] sm:$0xf]
      %v235 = vld [vmem:[%s169 + $0x114] sm:$0xf]
      %v236 = vld [vmem:[%s169 + $0x118] sm:$0xf]
      %v237 = vld [vmem:[%s169 + $0x120] sm:$0xf]
      %v238 = vld [vmem:[%s169 + $0x124] sm:$0xf]
      %v239 = vld [vmem:[%s169 + $0x128] sm:$0xf]
      %v240 = vld [vmem:[%s169 + $0x12c] sm:$0xf]
      %v241 = vld [vmem:[%s169 + $0x130] sm:$0xf]
      %v242 = vld [vmem:[%s169 + $0x138] sm:$0xf]
      %v243 = vld [vmem:[%s169 + $0x13c] sm:$0xf]
      %v244 = vld [vmem:[%s169 + $0x140] sm:$0xf]
      %v245 = vld [vmem:[%s169 + $0x144] sm:$0xf]
      %v246 = vld [vmem:[%s169 + $0x148] sm:$0xf]
      %v247 = vld [vmem:[%s169 + $0x150] sm:$0xf]
      %v248 = vld [vmem:[%s169 + $0x154] sm:$0xf]
      %v249 = vld [vmem:[%s169 + $0x158] sm:$0xf]
      %v250 = vld [vmem:[%s169 + $0x15c] sm:$0xf]
      %v251 = vld [vmem:[%s169 + $0x160] sm:$0xf]
      %v252 = vld [vmem:[%s169 + $0x168] sm:$0xf]
      %v253 = vld [vmem:[%s169 + $0x16c] sm:$0xf]
      %v254 = vld [vmem:[%s169 + $0x170] sm:$0xf]
      %v255 = vld [vmem:[%s169 + $0x174] sm:$0xf]
      %v256 = vld [vmem:[%s169 + $0x178] sm:$0xf]
      %v321 = vunpack.c.l.b16 %v177
      %v322 = vunpack.c.l.b16 %v178
      %v323 = vunpack.c.l.b16 %v179
      %v324 = vunpack.c.l.b16 %v180
      %v325 = vunpack.c.l.b16 %v182
      %v326 = vunpack.c.l.b16 %v183
      %v327 = vunpack.c.l.b16 %v184
      %v328 = vunpack.c.l.b16 %v185
      %v329 = vunpack.c.l.b16 %v187
      %v330 = vunpack.c.l.b16 %v188
      %v331 = vunpack.c.l.b16 %v189
      %v332 = vunpack.c.l.b16 %v190
      %v333 = vunpack.c.l.b16 %v192
      %v334 = vunpack.c.l.b16 %v193
      %v335 = vunpack.c.l.b16 %v194
      %v336 = vunpack.c.l.b16 %v195
      %v337 = vunpack.c.l.b16 %v197
      %v338 = vunpack.c.l.b16 %v198
      %v339 = vunpack.c.l.b16 %v199
      %v340 = vunpack.c.l.b16 %v200
      %v341 = vunpack.c.l.b16 %v202
      %v342 = vunpack.c.l.b16 %v203
      %v343 = vunpack.c.l.b16 %v204
      %v344 = vunpack.c.l.b16 %v205
      %v345 = vunpack.c.l.b16 %v207
      %v346 = vunpack.c.l.b16 %v208
      %v347 = vunpack.c.l.b16 %v209
      %v348 = vunpack.c.l.b16 %v210
      %v349 = vunpack.c.l.b16 %v212
      %v350 = vunpack.c.l.b16 %v213
      %v351 = vunpack.c.l.b16 %v214
      %v352 = vunpack.c.l.b16 %v215
      %v353 = vunpack.c.l.b16 %v217
      %v354 = vunpack.c.l.b16 %v218
      %v355 = vunpack.c.l.b16 %v219
      %v356 = vunpack.c.l.b16 %v220
      %v357 = vunpack.c.l.b16 %v222
      %v358 = vunpack.c.l.b16 %v223
      %v359 = vunpack.c.l.b16 %v224
      %v360 = vunpack.c.l.b16 %v225
      %v361 = vunpack.c.l.b16 %v227
      %v362 = vunpack.c.l.b16 %v228
      %v363 = vunpack.c.l.b16 %v229
      %v364 = vunpack.c.l.b16 %v230
      %v365 = vunpack.c.l.b16 %v232
      %v366 = vunpack.c.l.b16 %v233
      %v367 = vunpack.c.l.b16 %v234
      %v368 = vunpack.c.l.b16 %v235
      %v369 = vunpack.c.l.b16 %v237
      %v370 = vunpack.c.l.b16 %v238
      %v371 = vunpack.c.l.b16 %v239
      %v372 = vunpack.c.l.b16 %v240
      %v373 = vunpack.c.l.b16 %v242
      %v374 = vunpack.c.l.b16 %v243
      %v375 = vunpack.c.l.b16 %v244
      %v376 = vunpack.c.l.b16 %v245
      %v377 = vunpack.c.l.b16 %v247
      %v378 = vunpack.c.l.b16 %v248
      %v379 = vunpack.c.l.b16 %v249
      %v380 = vunpack.c.l.b16 %v250
      %v381 = vunpack.c.l.b16 %v252
      %v382 = vunpack.c.l.b16 %v253
      %v383 = vunpack.c.l.b16 %v254
      %v384 = vunpack.c.l.b16 %v255
      %v385 = vpack.c.b16 %v322, %v321
      %v386 = vpack.c.b16 %v324, %v323
      %v387 = vpack.c.b16 %v326, %v325
      %v388 = vpack.c.b16 %v328, %v327
      %v389 = vpack.c.b16 %v330, %v329
      %v390 = vpack.c.b16 %v332, %v331
      %v391 = vpack.c.b16 %v334, %v333
      %v392 = vpack.c.b16 %v336, %v335
      %v393 = vpack.c.b16 %v338, %v337
      %v394 = vpack.c.b16 %v340, %v339
      %v395 = vpack.c.b16 %v342, %v341
      %v396 = vpack.c.b16 %v344, %v343
      %v397 = vpack.c.b16 %v346, %v345
      %v398 = vpack.c.b16 %v348, %v347
      %v399 = vpack.c.b16 %v350, %v349
      %v400 = vpack.c.b16 %v352, %v351
      %v401 = vpack.c.b16 %v354, %v353
      %v402 = vpack.c.b16 %v356, %v355
      %v403 = vpack.c.b16 %v358, %v357
      %v404 = vpack.c.b16 %v360, %v359
      %v405 = vpack.c.b16 %v362, %v361
      %v406 = vpack.c.b16 %v364, %v363
      %v407 = vpack.c.b16 %v366, %v365
      %v408 = vpack.c.b16 %v368, %v367
      %v409 = vpack.c.b16 %v370, %v369
      %v410 = vpack.c.b16 %v372, %v371
      %v411 = vpack.c.b16 %v374, %v373
      %v412 = vpack.c.b16 %v376, %v375
      %v413 = vpack.c.b16 %v378, %v377
      %v414 = vpack.c.b16 %v380, %v379
      %v415 = vpack.c.b16 %v382, %v381
      %v416 = vpack.c.b16 %v384, %v383
      %v433 = vunpack.c.l.b16 %v181
      %v434 = vunpack.c.l.b16 %v186
      %v435 = vunpack.c.l.b16 %v191
      %v436 = vunpack.c.l.b16 %v196
      %v437 = vunpack.c.l.b16 %v201
      %v438 = vunpack.c.l.b16 %v206
      %v439 = vunpack.c.l.b16 %v211
      %v440 = vunpack.c.l.b16 %v216
      %v441 = vunpack.c.l.b16 %v221
      %v442 = vunpack.c.l.b16 %v226
      %v443 = vunpack.c.l.b16 %v231
      %v444 = vunpack.c.l.b16 %v236
      %v445 = vunpack.c.l.b16 %v241
      %v446 = vunpack.c.l.b16 %v246
      %v447 = vunpack.c.l.b16 %v251
      %v448 = vunpack.c.l.b16 %v256
      %v449 = vpack.c.b16 %v433, %v433
      %v450 = vpack.c.b16 %v434, %v434
      %v451 = vpack.c.b16 %v435, %v435
      %v452 = vpack.c.b16 %v436, %v436
      %v453 = vpack.c.b16 %v437, %v437
      %v454 = vpack.c.b16 %v438, %v438
      %v455 = vpack.c.b16 %v439, %v439
      %v456 = vpack.c.b16 %v440, %v440
      %v457 = vpack.c.b16 %v441, %v441
      %v458 = vpack.c.b16 %v442, %v442
      %v459 = vpack.c.b16 %v443, %v443
      %v460 = vpack.c.b16 %v444, %v444
      %v461 = vpack.c.b16 %v445, %v445
      %v462 = vpack.c.b16 %v446, %v446
      %v463 = vpack.c.b16 %v447, %v447
      %v464 = vpack.c.b16 %v448, %v448
      %vm465 = vsmask.f32 7424
      %v467 = vshrl.u32 %v385, 16
      %v469 = vshll.u32 %v385, 16
      %v471 = vrot.slane %v469, 1
      %v472 = vor.u32 %v467, %v471
      %v474 = vshll.u32 %v386, 16
      %v476 = vrot.slane %v474, 1
      %v477 = vsel %vm465, %v472, %v476
      %v478 = vshrl.u32 %v386, 16
      %v480 = vor.u32 %v478, %v476
      %v482 = vshll.u32 %v449, 16
      %v484 = vrot.slane %v482, 1
      %v485 = vsel %vm465, %v480, %v484
      %v487 = vshrl.u32 %v387, 16
      %v489 = vshll.u32 %v387, 16
      %v491 = vrot.slane %v489, 1
      %v492 = vor.u32 %v487, %v491
      %v494 = vshll.u32 %v388, 16
      %v496 = vrot.slane %v494, 1
      %v497 = vsel %vm465, %v492, %v496
      %v498 = vshrl.u32 %v388, 16
      %v500 = vor.u32 %v498, %v496
      %v502 = vshll.u32 %v450, 16
      %v504 = vrot.slane %v502, 1
      %v505 = vsel %vm465, %v500, %v504
      %v507 = vshrl.u32 %v389, 16
      %v509 = vshll.u32 %v389, 16
      %v511 = vrot.slane %v509, 1
      %v512 = vor.u32 %v507, %v511
      %v514 = vshll.u32 %v390, 16
      %v516 = vrot.slane %v514, 1
      %v517 = vsel %vm465, %v512, %v516
      %v518 = vshrl.u32 %v390, 16
      %v520 = vor.u32 %v518, %v516
      %v522 = vshll.u32 %v451, 16
      %v524 = vrot.slane %v522, 1
      %v525 = vsel %vm465, %v520, %v524
      %v527 = vshrl.u32 %v391, 16
      %v529 = vshll.u32 %v391, 16
      %v531 = vrot.slane %v529, 1
      %v532 = vor.u32 %v527, %v531
      %v534 = vshll.u32 %v392, 16
      %v536 = vrot.slane %v534, 1
      %v537 = vsel %vm465, %v532, %v536
      %v538 = vshrl.u32 %v392, 16
      %v540 = vor.u32 %v538, %v536
      %v542 = vshll.u32 %v452, 16
      %v544 = vrot.slane %v542, 1
      %v545 = vsel %vm465, %v540, %v544
      %v547 = vshrl.u32 %v393, 16
      %v549 = vshll.u32 %v393, 16
      %v551 = vrot.slane %v549, 1
      %v552 = vor.u32 %v547, %v551
      %v554 = vshll.u32 %v394, 16
      %v556 = vrot.slane %v554, 1
      %v557 = vsel %vm465, %v552, %v556
      %v558 = vshrl.u32 %v394, 16
      %v560 = vor.u32 %v558, %v556
      %v562 = vshll.u32 %v453, 16
      %v564 = vrot.slane %v562, 1
      %v565 = vsel %vm465, %v560, %v564
      %v567 = vshrl.u32 %v395, 16
      %v569 = vshll.u32 %v395, 16
      %v571 = vrot.slane %v569, 1
      %v572 = vor.u32 %v567, %v571
      %v574 = vshll.u32 %v396, 16
      %v576 = vrot.slane %v574, 1
      %v577 = vsel %vm465, %v572, %v576
      %v578 = vshrl.u32 %v396, 16
      %v580 = vor.u32 %v578, %v576
      %v582 = vshll.u32 %v454, 16
      %v584 = vrot.slane %v582, 1
      %v585 = vsel %vm465, %v580, %v584
      %v587 = vshrl.u32 %v397, 16
      %v589 = vshll.u32 %v397, 16
      %v591 = vrot.slane %v589, 1
      %v592 = vor.u32 %v587, %v591
      %v594 = vshll.u32 %v398, 16
      %v596 = vrot.slane %v594, 1
      %v597 = vsel %vm465, %v592, %v596
      %v598 = vshrl.u32 %v398, 16
      %v600 = vor.u32 %v598, %v596
      %v602 = vshll.u32 %v455, 16
      %v604 = vrot.slane %v602, 1
      %v605 = vsel %vm465, %v600, %v604
      %v607 = vshrl.u32 %v399, 16
      %v609 = vshll.u32 %v399, 16
      %v611 = vrot.slane %v609, 1
      %v612 = vor.u32 %v607, %v611
      %v614 = vshll.u32 %v400, 16
      %v616 = vrot.slane %v614, 1
      %v617 = vsel %vm465, %v612, %v616
      %v618 = vshrl.u32 %v400, 16
      %v620 = vor.u32 %v618, %v616
      %v622 = vshll.u32 %v456, 16
      %v624 = vrot.slane %v622, 1
      %v625 = vsel %vm465, %v620, %v624
      %v627 = vshrl.u32 %v401, 16
      %v629 = vshll.u32 %v401, 16
      %v631 = vrot.slane %v629, 1
      %v632 = vor.u32 %v627, %v631
      %v634 = vshll.u32 %v402, 16
      %v636 = vrot.slane %v634, 1
      %v637 = vsel %vm465, %v632, %v636
      %v638 = vshrl.u32 %v402, 16
      %v640 = vor.u32 %v638, %v636
      %v642 = vshll.u32 %v457, 16
      %v644 = vrot.slane %v642, 1
      %v645 = vsel %vm465, %v640, %v644
      %v647 = vshrl.u32 %v403, 16
      %v649 = vshll.u32 %v403, 16
      %v651 = vrot.slane %v649, 1
      %v652 = vor.u32 %v647, %v651
      %v654 = vshll.u32 %v404, 16
      %v656 = vrot.slane %v654, 1
      %v657 = vsel %vm465, %v652, %v656
      %v658 = vshrl.u32 %v404, 16
      %v660 = vor.u32 %v658, %v656
      %v662 = vshll.u32 %v458, 16
      %v664 = vrot.slane %v662, 1
      %v665 = vsel %vm465, %v660, %v664
      %v667 = vshrl.u32 %v405, 16
      %v669 = vshll.u32 %v405, 16
      %v671 = vrot.slane %v669, 1
      %v672 = vor.u32 %v667, %v671
      %v674 = vshll.u32 %v406, 16
      %v676 = vrot.slane %v674, 1
      %v677 = vsel %vm465, %v672, %v676
      %v678 = vshrl.u32 %v406, 16
      %v680 = vor.u32 %v678, %v676
      %v682 = vshll.u32 %v459, 16
      %v684 = vrot.slane %v682, 1
      %v685 = vsel %vm465, %v680, %v684
      %v687 = vshrl.u32 %v407, 16
      %v689 = vshll.u32 %v407, 16
      %v691 = vrot.slane %v689, 1
      %v692 = vor.u32 %v687, %v691
      %v694 = vshll.u32 %v408, 16
      %v696 = vrot.slane %v694, 1
      %v697 = vsel %vm465, %v692, %v696
      %v698 = vshrl.u32 %v408, 16
      %v700 = vor.u32 %v698, %v696
      %v702 = vshll.u32 %v460, 16
      %v704 = vrot.slane %v702, 1
      %v705 = vsel %vm465, %v700, %v704
      %v707 = vshrl.u32 %v409, 16
      %v709 = vshll.u32 %v409, 16
      %v711 = vrot.slane %v709, 1
      %v712 = vor.u32 %v707, %v711
      %v714 = vshll.u32 %v410, 16
      %v716 = vrot.slane %v714, 1
      %v717 = vsel %vm465, %v712, %v716
      %v718 = vshrl.u32 %v410, 16
      %v720 = vor.u32 %v718, %v716
      %v722 = vshll.u32 %v461, 16
      %v724 = vrot.slane %v722, 1
      %v725 = vsel %vm465, %v720, %v724
      %v727 = vshrl.u32 %v411, 16
      %v729 = vshll.u32 %v411, 16
      %v731 = vrot.slane %v729, 1
      %v732 = vor.u32 %v727, %v731
      %v734 = vshll.u32 %v412, 16
      %v736 = vrot.slane %v734, 1
      %v737 = vsel %vm465, %v732, %v736
      %v738 = vshrl.u32 %v412, 16
      %v740 = vor.u32 %v738, %v736
      %v742 = vshll.u32 %v462, 16
      %v744 = vrot.slane %v742, 1
      %v745 = vsel %vm465, %v740, %v744
      %v747 = vshrl.u32 %v413, 16
      %v749 = vshll.u32 %v413, 16
      %v751 = vrot.slane %v749, 1
      %v752 = vor.u32 %v747, %v751
      %v754 = vshll.u32 %v414, 16
      %v756 = vrot.slane %v754, 1
      %v757 = vsel %vm465, %v752, %v756
      %v758 = vshrl.u32 %v414, 16
      %v760 = vor.u32 %v758, %v756
      %v762 = vshll.u32 %v463, 16
      %v764 = vrot.slane %v762, 1
      %v765 = vsel %vm465, %v760, %v764
      %v767 = vshrl.u32 %v415, 16
      %v769 = vshll.u32 %v415, 16
      %v771 = vrot.slane %v769, 1
      %v772 = vor.u32 %v767, %v771
      %v774 = vshll.u32 %v416, 16
      %v776 = vrot.slane %v774, 1
      %v777 = vsel %vm465, %v772, %v776
      %v778 = vshrl.u32 %v416, 16
      %v780 = vor.u32 %v778, %v776
      %v782 = vshll.u32 %v464, 16
      %v784 = vrot.slane %v782, 1
      %v785 = vsel %vm465, %v780, %v784
      %786 = vrot.lane.b32.xlu0 %v477, 50
      %v787 = vpop.permute.xlu0 %786
      %788 = vrot.lane.b32.xlu0 %v485, 50
      %v789 = vpop.permute.xlu0 %788
      %790 = vrot.lane.b32.xlu0 %v497, 50
      %v791 = vpop.permute.xlu0 %790
      %792 = vrot.lane.b32.xlu0 %v505, 50
      %v793 = vpop.permute.xlu0 %792
      %794 = vrot.lane.b32.xlu0 %v517, 50
      %v795 = vpop.permute.xlu0 %794
      %796 = vrot.lane.b32.xlu0 %v525, 50
      %v797 = vpop.permute.xlu0 %796
      %798 = vrot.lane.b32.xlu0 %v537, 50
      %v799 = vpop.permute.xlu0 %798
      %800 = vrot.lane.b32.xlu0 %v545, 50
      %v801 = vpop.permute.xlu0 %800
      %802 = vrot.lane.b32.xlu0 %v557, 50
      %v803 = vpop.permute.xlu0 %802
      %804 = vrot.lane.b32.xlu0 %v565, 50
      %v805 = vpop.permute.xlu0 %804
      %806 = vrot.lane.b32.xlu0 %v577, 50
      %v807 = vpop.permute.xlu0 %806
      %808 = vrot.lane.b32.xlu0 %v585, 50
      %v809 = vpop.permute.xlu0 %808
      %810 = vrot.lane.b32.xlu0 %v597, 50
      %v811 = vpop.permute.xlu0 %810
      %812 = vrot.lane.b32.xlu0 %v605, 50
      %v813 = vpop.permute.xlu0 %812
      %814 = vrot.lane.b32.xlu0 %v617, 50
      %v815 = vpop.permute.xlu0 %814
      %816 = vrot.lane.b32.xlu0 %v625, 50
      %v817 = vpop.permute.xlu0 %816
      %818 = vrot.lane.b32.xlu0 %v637, 50
      %v819 = vpop.permute.xlu0 %818
      %820 = vrot.lane.b32.xlu0 %v645, 50
      %v821 = vpop.permute.xlu0 %820
      %822 = vrot.lane.b32.xlu0 %v657, 50
      %v823 = vpop.permute.xlu0 %822
      %824 = vrot.lane.b32.xlu0 %v665, 50
      %v825 = vpop.permute.xlu0 %824
      %826 = vrot.lane.b32.xlu0 %v677, 50
      %v827 = vpop.permute.xlu0 %826
      %828 = vrot.lane.b32.xlu0 %v685, 50
      %v829 = vpop.permute.xlu0 %828
      %830 = vrot.lane.b32.xlu0 %v697, 50
      %v831 = vpop.permute.xlu0 %830
      %832 = vrot.lane.b32.xlu0 %v705, 50
      %v833 = vpop.permute.xlu0 %832
      %834 = vrot.lane.b32.xlu0 %v717, 50
      %v835 = vpop.permute.xlu0 %834
      %836 = vrot.lane.b32.xlu0 %v725, 50
      %v837 = vpop.permute.xlu0 %836
      %838 = vrot.lane.b32.xlu0 %v737, 50
      %v839 = vpop.permute.xlu0 %838
      %840 = vrot.lane.b32.xlu0 %v745, 50
      %v841 = vpop.permute.xlu0 %840
      %842 = vrot.lane.b32.xlu0 %v757, 50
      %v843 = vpop.permute.xlu0 %842
      %844 = vrot.lane.b32.xlu0 %v765, 50
      %v845 = vpop.permute.xlu0 %844
      %846 = vrot.lane.b32.xlu0 %v777, 50
      %v847 = vpop.permute.xlu0 %846
      %848 = vrot.lane.b32.xlu0 %v785, 50
      %v849 = vpop.permute.xlu0 %848
      %vm850 = vcmask 1046528
      %v851 = vrot.slane %v385, 1
      %v852 = vrot.slane %v386, 1
      %v853 = vsel %vm850, %v851, %v852
      %v854 = vrot.slane %v449, 1
      %v855 = vsel %vm850, %v852, %v854
      %v856 = vrot.slane %v387, 1
      %v857 = vrot.slane %v388, 1
      %v858 = vsel %vm850, %v856, %v857
      %v859 = vrot.slane %v450, 1
      %v860 = vsel %vm850, %v857, %v859
      %v861 = vrot.slane %v389, 1
      %v862 = vrot.slane %v390, 1
      %v863 = vsel %vm850, %v861, %v862
      %v864 = vrot.slane %v451, 1
      %v865 = vsel %vm850, %v862, %v864
      %v866 = vrot.slane %v391, 1
      %v867 = vrot.slane %v392, 1
      %v868 = vsel %vm850, %v866, %v867
      %v869 = vrot.slane %v452, 1
      %v870 = vsel %vm850, %v867, %v869
      %v871 = vrot.slane %v393, 1
      %v872 = vrot.slane %v394, 1
      %v873 = vsel %vm850, %v871, %v872
      %v874 = vrot.slane %v453, 1
      %v875 = vsel %vm850, %v872, %v874
      %v876 = vrot.slane %v395, 1
      %v877 = vrot.slane %v396, 1
      %v878 = vsel %vm850, %v876, %v877
      %v879 = vrot.slane %v454, 1
      %v880 = vsel %vm850, %v877, %v879
      %v881 = vrot.slane %v397, 1
      %v882 = vrot.slane %v398, 1
      %v883 = vsel %vm850, %v881, %v882
      %v884 = vrot.slane %v455, 1
      %v885 = vsel %vm850, %v882, %v884
      %v886 = vrot.slane %v399, 1
      %v887 = vrot.slane %v400, 1
      %v888 = vsel %vm850, %v886, %v887
      %v889 = vrot.slane %v456, 1
      %v890 = vsel %vm850, %v887, %v889
      %v891 = vrot.slane %v401, 1
      %v892 = vrot.slane %v402, 1
      %v893 = vsel %vm850, %v891, %v892
      %v894 = vrot.slane %v457, 1
      %v895 = vsel %vm850, %v892, %v894
      %v896 = vrot.slane %v403, 1
      %v897 = vrot.slane %v404, 1
      %v898 = vsel %vm850, %v896, %v897
      %v899 = vrot.slane %v458, 1
      %v900 = vsel %vm850, %v897, %v899
      %v901 = vrot.slane %v405, 1
      %v902 = vrot.slane %v406, 1
      %v903 = vsel %vm850, %v901, %v902
      %v904 = vrot.slane %v459, 1
      %v905 = vsel %vm850, %v902, %v904
      %v906 = vrot.slane %v407, 1
      %v907 = vrot.slane %v408, 1
      %v908 = vsel %vm850, %v906, %v907
      %v909 = vrot.slane %v460, 1
      %v910 = vsel %vm850, %v907, %v909
      %v911 = vrot.slane %v409, 1
      %v912 = vrot.slane %v410, 1
      %v913 = vsel %vm850, %v911, %v912
      %v914 = vrot.slane %v461, 1
      %v915 = vsel %vm850, %v912, %v914
      %v916 = vrot.slane %v411, 1
      %v917 = vrot.slane %v412, 1
      %v918 = vsel %vm850, %v916, %v917
      %v919 = vrot.slane %v462, 1
      %v920 = vsel %vm850, %v917, %v919
      %v921 = vrot.slane %v413, 1
      %v922 = vrot.slane %v414, 1
      %v923 = vsel %vm850, %v921, %v922
      %v924 = vrot.slane %v463, 1
      %v925 = vsel %vm850, %v922, %v924
      %v926 = vrot.slane %v415, 1
      %v927 = vrot.slane %v416, 1
      %v928 = vsel %vm850, %v926, %v927
      %v929 = vrot.slane %v464, 1
      %v930 = vsel %vm850, %v927, %v929
      %931 = vrot.lane.b32.xlu0 %v853, 100
      %v932 = vpop.permute.xlu0 %931
      %933 = vrot.lane.b32.xlu0 %v855, 100
      %v934 = vpop.permute.xlu0 %933
      %935 = vrot.lane.b32.xlu0 %v858, 100
      %v936 = vpop.permute.xlu0 %935
      %937 = vrot.lane.b32.xlu0 %v860, 100
      %v938 = vpop.permute.xlu0 %937
      %939 = vrot.lane.b32.xlu0 %v863, 100
      %v940 = vpop.permute.xlu0 %939
      %941 = vrot.lane.b32.xlu0 %v865, 100
      %v942 = vpop.permute.xlu0 %941
      %943 = vrot.lane.b32.xlu0 %v868, 100
      %v944 = vpop.permute.xlu0 %943
      %945 = vrot.lane.b32.xlu0 %v870, 100
      %v946 = vpop.permute.xlu0 %945
      %947 = vrot.lane.b32.xlu0 %v873, 100
      %v948 = vpop.permute.xlu0 %947
      %949 = vrot.lane.b32.xlu0 %v875, 100
      %v950 = vpop.permute.xlu0 %949
      %951 = vrot.lane.b32.xlu0 %v878, 100
      %v952 = vpop.permute.xlu0 %951
      %953 = vrot.lane.b32.xlu0 %v880, 100
      %v954 = vpop.permute.xlu0 %953
      %955 = vrot.lane.b32.xlu0 %v883, 100
      %v956 = vpop.permute.xlu0 %955
      %957 = vrot.lane.b32.xlu0 %v885, 100
      %v958 = vpop.permute.xlu0 %957
      %959 = vrot.lane.b32.xlu0 %v888, 100
      %v960 = vpop.permute.xlu0 %959
      %961 = vrot.lane.b32.xlu0 %v890, 100
      %v962 = vpop.permute.xlu0 %961
      %963 = vrot.lane.b32.xlu0 %v893, 100
      %v964 = vpop.permute.xlu0 %963
      %965 = vrot.lane.b32.xlu0 %v895, 100
      %v966 = vpop.permute.xlu0 %965
      %967 = vrot.lane.b32.xlu0 %v898, 100
      %v968 = vpop.permute.xlu0 %967
      %969 = vrot.lane.b32.xlu0 %v900, 100
      %v970 = vpop.permute.xlu0 %969
      %971 = vrot.lane.b32.xlu0 %v903, 100
      %v972 = vpop.permute.xlu0 %971
      %973 = vrot.lane.b32.xlu0 %v905, 100
      %v974 = vpop.permute.xlu0 %973
      %975 = vrot.lane.b32.xlu0 %v908, 100
      %v976 = vpop.permute.xlu0 %975
      %977 = vrot.lane.b32.xlu0 %v910, 100
      %v978 = vpop.permute.xlu0 %977
      %979 = vrot.lane.b32.xlu0 %v913, 100
      %v980 = vpop.permute.xlu0 %979
      %981 = vrot.lane.b32.xlu0 %v915, 100
      %v982 = vpop.permute.xlu0 %981
      %983 = vrot.lane.b32.xlu0 %v918, 100
      %v984 = vpop.permute.xlu0 %983
      %985 = vrot.lane.b32.xlu0 %v920, 100
      %v986 = vpop.permute.xlu0 %985
      %987 = vrot.lane.b32.xlu0 %v923, 100
      %v988 = vpop.permute.xlu0 %987
      %989 = vrot.lane.b32.xlu0 %v925, 100
      %v990 = vpop.permute.xlu0 %989
      %991 = vrot.lane.b32.xlu0 %v928, 100
      %v992 = vpop.permute.xlu0 %991
      %993 = vrot.lane.b32.xlu0 %v930, 100
      %v994 = vpop.permute.xlu0 %993
      %vm995 = vsmask.f32 6400
      %v996 = vrot.slane %v467, 1
      %v997 = vrot.slane %v469, 2
      %v998 = vor.u32 %v996, %v997
      %v999 = vrot.slane %v478, 1
      %v1000 = vrot.slane %v474, 2
      %v1001 = vor.u32 %v999, %v1000
      %v1002 = vsel %vm995, %v998, %v1001
      %v1003 = vshrl.u32 %v449, 16
      %v1005 = vrot.slane %v1003, 1
      %v1006 = vrot.slane %v482, 2
      %v1007 = vor.u32 %v1005, %v1006
      %v1008 = vsel %vm995, %v1001, %v1007
      %v1009 = vrot.slane %v487, 1
      %v1010 = vrot.slane %v489, 2
      %v1011 = vor.u32 %v1009, %v1010
      %v1012 = vrot.slane %v498, 1
      %v1013 = vrot.slane %v494, 2
      %v1014 = vor.u32 %v1012, %v1013
      %v1015 = vsel %vm995, %v1011, %v1014
      %v1016 = vshrl.u32 %v450, 16
      %v1018 = vrot.slane %v1016, 1
      %v1019 = vrot.slane %v502, 2
      %v1020 = vor.u32 %v1018, %v1019
      %v1021 = vsel %vm995, %v1014, %v1020
      %v1022 = vrot.slane %v507, 1
      %v1023 = vrot.slane %v509, 2
      %v1024 = vor.u32 %v1022, %v1023
      %v1025 = vrot.slane %v518, 1
      %v1026 = vrot.slane %v514, 2
      %v1027 = vor.u32 %v1025, %v1026
      %v1028 = vsel %vm995, %v1024, %v1027
      %v1029 = vshrl.u32 %v451, 16
      %v1031 = vrot.slane %v1029, 1
      %v1032 = vrot.slane %v522, 2
      %v1033 = vor.u32 %v1031, %v1032
      %v1034 = vsel %vm995, %v1027, %v1033
      %v1035 = vrot.slane %v527, 1
      %v1036 = vrot.slane %v529, 2
      %v1037 = vor.u32 %v1035, %v1036
      %v1038 = vrot.slane %v538, 1
      %v1039 = vrot.slane %v534, 2
      %v1040 = vor.u32 %v1038, %v1039
      %v1041 = vsel %vm995, %v1037, %v1040
      %v1042 = vshrl.u32 %v452, 16
      %v1044 = vrot.slane %v1042, 1
      %v1045 = vrot.slane %v542, 2
      %v1046 = vor.u32 %v1044, %v1045
      %v1047 = vsel %vm995, %v1040, %v1046
      %v1048 = vrot.slane %v547, 1
      %v1049 = vrot.slane %v549, 2
      %v1050 = vor.u32 %v1048, %v1049
      %v1051 = vrot.slane %v558, 1
      %v1052 = vrot.slane %v554, 2
      %v1053 = vor.u32 %v1051, %v1052
      %v1054 = vsel %vm995, %v1050, %v1053
      %v1055 = vshrl.u32 %v453, 16
      %v1057 = vrot.slane %v1055, 1
      %v1058 = vrot.slane %v562, 2
      %v1059 = vor.u32 %v1057, %v1058
      %v1060 = vsel %vm995, %v1053, %v1059
      %v1061 = vrot.slane %v567, 1
      %v1062 = vrot.slane %v569, 2
      %v1063 = vor.u32 %v1061, %v1062
      %v1064 = vrot.slane %v578, 1
      %v1065 = vrot.slane %v574, 2
      %v1066 = vor.u32 %v1064, %v1065
      %v1067 = vsel %vm995, %v1063, %v1066
      %v1068 = vshrl.u32 %v454, 16
      %v1070 = vrot.slane %v1068, 1
      %v1071 = vrot.slane %v582, 2
      %v1072 = vor.u32 %v1070, %v1071
      %v1073 = vsel %vm995, %v1066, %v1072
      %v1074 = vrot.slane %v587, 1
      %v1075 = vrot.slane %v589, 2
      %v1076 = vor.u32 %v1074, %v1075
      %v1077 = vrot.slane %v598, 1
      %v1078 = vrot.slane %v594, 2
      %v1079 = vor.u32 %v1077, %v1078
      %v1080 = vsel %vm995, %v1076, %v1079
      %v1081 = vshrl.u32 %v455, 16
      %v1083 = vrot.slane %v1081, 1
      %v1084 = vrot.slane %v602, 2
      %v1085 = vor.u32 %v1083, %v1084
      %v1086 = vsel %vm995, %v1079, %v1085
      %v1087 = vrot.slane %v607, 1
      %v1088 = vrot.slane %v609, 2
      %v1089 = vor.u32 %v1087, %v1088
      %v1090 = vrot.slane %v618, 1
      %v1091 = vrot.slane %v614, 2
      %v1092 = vor.u32 %v1090, %v1091
      %v1093 = vsel %vm995, %v1089, %v1092
      %v1094 = vshrl.u32 %v456, 16
      %v1096 = vrot.slane %v1094, 1
      %v1097 = vrot.slane %v622, 2
      %v1098 = vor.u32 %v1096, %v1097
      %v1099 = vsel %vm995, %v1092, %v1098
      %v1100 = vrot.slane %v627, 1
      %v1101 = vrot.slane %v629, 2
      %v1102 = vor.u32 %v1100, %v1101
      %v1103 = vrot.slane %v638, 1
      %v1104 = vrot.slane %v634, 2
      %v1105 = vor.u32 %v1103, %v1104
      %v1106 = vsel %vm995, %v1102, %v1105
      %v1107 = vshrl.u32 %v457, 16
      %v1109 = vrot.slane %v1107, 1
      %v1110 = vrot.slane %v642, 2
      %v1111 = vor.u32 %v1109, %v1110
      %v1112 = vsel %vm995, %v1105, %v1111
      %v1113 = vrot.slane %v647, 1
      %v1114 = vrot.slane %v649, 2
      %v1115 = vor.u32 %v1113, %v1114
      %v1116 = vrot.slane %v658, 1
      %v1117 = vrot.slane %v654, 2
      %v1118 = vor.u32 %v1116, %v1117
      %v1119 = vsel %vm995, %v1115, %v1118
      %v1120 = vshrl.u32 %v458, 16
      %v1122 = vrot.slane %v1120, 1
      %v1123 = vrot.slane %v662, 2
      %v1124 = vor.u32 %v1122, %v1123
      %v1125 = vsel %vm995, %v1118, %v1124
      %v1126 = vrot.slane %v667, 1
      %v1127 = vrot.slane %v669, 2
      %v1128 = vor.u32 %v1126, %v1127
      %v1129 = vrot.slane %v678, 1
      %v1130 = vrot.slane %v674, 2
      %v1131 = vor.u32 %v1129, %v1130
      %v1132 = vsel %vm995, %v1128, %v1131
      %v1133 = vshrl.u32 %v459, 16
      %v1135 = vrot.slane %v1133, 1
      %v1136 = vrot.slane %v682, 2
      %v1137 = vor.u32 %v1135, %v1136
      %v1138 = vsel %vm995, %v1131, %v1137
      %v1139 = vrot.slane %v687, 1
      %v1140 = vrot.slane %v689, 2
      %v1141 = vor.u32 %v1139, %v1140
      %v1142 = vrot.slane %v698, 1
      %v1143 = vrot.slane %v694, 2
      %v1144 = vor.u32 %v1142, %v1143
      %v1145 = vsel %vm995, %v1141, %v1144
      %v1146 = vshrl.u32 %v460, 16
      %v1148 = vrot.slane %v1146, 1
      %v1149 = vrot.slane %v702, 2
      %v1150 = vor.u32 %v1148, %v1149
      %v1151 = vsel %vm995, %v1144, %v1150
      %v1152 = vrot.slane %v707, 1
      %v1153 = vrot.slane %v709, 2
      %v1154 = vor.u32 %v1152, %v1153
      %v1155 = vrot.slane %v718, 1
      %v1156 = vrot.slane %v714, 2
      %v1157 = vor.u32 %v1155, %v1156
      %v1158 = vsel %vm995, %v1154, %v1157
      %v1159 = vshrl.u32 %v461, 16
      %v1161 = vrot.slane %v1159, 1
      %v1162 = vrot.slane %v722, 2
      %v1163 = vor.u32 %v1161, %v1162
      %v1164 = vsel %vm995, %v1157, %v1163
      %v1165 = vrot.slane %v727, 1
      %v1166 = vrot.slane %v729, 2
      %v1167 = vor.u32 %v1165, %v1166
      %v1168 = vrot.slane %v738, 1
      %v1169 = vrot.slane %v734, 2
      %v1170 = vor.u32 %v1168, %v1169
      %v1171 = vsel %vm995, %v1167, %v1170
      %v1172 = vshrl.u32 %v462, 16
      %v1174 = vrot.slane %v1172, 1
      %v1175 = vrot.slane %v742, 2
      %v1176 = vor.u32 %v1174, %v1175
      %v1177 = vsel %vm995, %v1170, %v1176
      %v1178 = vrot.slane %v747, 1
      %v1179 = vrot.slane %v749, 2
      %v1180 = vor.u32 %v1178, %v1179
      %v1181 = vrot.slane %v758, 1
      %v1182 = vrot.slane %v754, 2
      %v1183 = vor.u32 %v1181, %v1182
      %v1184 = vsel %vm995, %v1180, %v1183
      %v1185 = vshrl.u32 %v463, 16
      %v1187 = vrot.slane %v1185, 1
      %v1188 = vrot.slane %v762, 2
      %v1189 = vor.u32 %v1187, %v1188
      %v1190 = vsel %vm995, %v1183, %v1189
      %v1191 = vrot.slane %v767, 1
      %v1192 = vrot.slane %v769, 2
      %v1193 = vor.u32 %v1191, %v1192
      %v1194 = vrot.slane %v778, 1
      %v1195 = vrot.slane %v774, 2
      %v1196 = vor.u32 %v1194, %v1195
      %v1197 = vsel %vm995, %v1193, %v1196
      %v1198 = vshrl.u32 %v464, 16
      %v1200 = vrot.slane %v1198, 1
      %v1201 = vrot.slane %v782, 2
      %v1202 = vor.u32 %v1200, %v1201
      %v1203 = vsel %vm995, %v1196, %v1202
      %1204 = vrot.lane.b32.xlu0 %v1002, 22
      %v1205 = vpop.permute.xlu0 %1204
      %1206 = vrot.lane.b32.xlu0 %v1008, 22
      %v1207 = vpop.permute.xlu0 %1206
      %1208 = vrot.lane.b32.xlu0 %v1015, 22
      %v1209 = vpop.permute.xlu0 %1208
      %1210 = vrot.lane.b32.xlu0 %v1021, 22
      %v1211 = vpop.permute.xlu0 %1210
      %1212 = vrot.lane.b32.xlu0 %v1028, 22
      %v1213 = vpop.permute.xlu0 %1212
      %1214 = vrot.lane.b32.xlu0 %v1034, 22
      %v1215 = vpop.permute.xlu0 %1214
      %1216 = vrot.lane.b32.xlu0 %v1041, 22
      %v1217 = vpop.permute.xlu0 %1216
      %1218 = vrot.lane.b32.xlu0 %v1047, 22
      %v1219 = vpop.permute.xlu0 %1218
      %1220 = vrot.lane.b32.xlu0 %v1054, 22
      %v1221 = vpop.permute.xlu0 %1220
      %1222 = vrot.lane.b32.xlu0 %v1060, 22
      %v1223 = vpop.permute.xlu0 %1222
      %1224 = vrot.lane.b32.xlu0 %v1067, 22
      %v1225 = vpop.permute.xlu0 %1224
      %1226 = vrot.lane.b32.xlu0 %v1073, 22
      %v1227 = vpop.permute.xlu0 %1226
      %1228 = vrot.lane.b32.xlu0 %v1080, 22
      %v1229 = vpop.permute.xlu0 %1228
      %1230 = vrot.lane.b32.xlu0 %v1086, 22
      %v1231 = vpop.permute.xlu0 %1230
      %1232 = vrot.lane.b32.xlu0 %v1093, 22
      %v1233 = vpop.permute.xlu0 %1232
      %1234 = vrot.lane.b32.xlu0 %v1099, 22
      %v1235 = vpop.permute.xlu0 %1234
      %1236 = vrot.lane.b32.xlu0 %v1106, 22
      %v1237 = vpop.permute.xlu0 %1236
      %1238 = vrot.lane.b32.xlu0 %v1112, 22
      %v1239 = vpop.permute.xlu0 %1238
      %1240 = vrot.lane.b32.xlu0 %v1119, 22
      %v1241 = vpop.permute.xlu0 %1240
      %1242 = vrot.lane.b32.xlu0 %v1125, 22
      %v1243 = vpop.permute.xlu0 %1242
      %1244 = vrot.lane.b32.xlu0 %v1132, 22
      %v1245 = vpop.permute.xlu0 %1244
      %1246 = vrot.lane.b32.xlu0 %v1138, 22
      %v1247 = vpop.permute.xlu0 %1246
      %1248 = vrot.lane.b32.xlu0 %v1145, 22
      %v1249 = vpop.permute.xlu0 %1248
      %1250 = vrot.lane.b32.xlu0 %v1151, 22
      %v1251 = vpop.permute.xlu0 %1250
      %1252 = vrot.lane.b32.xlu0 %v1158, 22
      %v1253 = vpop.permute.xlu0 %1252
      %1254 = vrot.lane.b32.xlu0 %v1164, 22
      %v1255 = vpop.permute.xlu0 %1254
      %1256 = vrot.lane.b32.xlu0 %v1171, 22
      %v1257 = vpop.permute.xlu0 %1256
      %1258 = vrot.lane.b32.xlu0 %v1177, 22
      %v1259 = vpop.permute.xlu0 %1258
      %1260 = vrot.lane.b32.xlu0 %v1184, 22
      %v1261 = vpop.permute.xlu0 %1260
      %1262 = vrot.lane.b32.xlu0 %v1190, 22
      %v1263 = vpop.permute.xlu0 %1262
      %1264 = vrot.lane.b32.xlu0 %v1197, 22
      %v1265 = vpop.permute.xlu0 %1264
      %1266 = vrot.lane.b32.xlu0 %v1203, 22
      %v1267 = vpop.permute.xlu0 %1266
      %vm1268 = vcmask 1045504
      %v1269 = vrot.slane %v385, 2
      %v1270 = vrot.slane %v386, 2
      %v1271 = vsel %vm1268, %v1269, %v1270
      %v1272 = vrot.slane %v449, 2
      %v1273 = vsel %vm1268, %v1270, %v1272
      %v1274 = vrot.slane %v387, 2
      %v1275 = vrot.slane %v388, 2
      %v1276 = vsel %vm1268, %v1274, %v1275
      %v1277 = vrot.slane %v450, 2
      %v1278 = vsel %vm1268, %v1275, %v1277
      %v1279 = vrot.slane %v389, 2
      %v1280 = vrot.slane %v390, 2
      %v1281 = vsel %vm1268, %v1279, %v1280
      %v1282 = vrot.slane %v451, 2
      %v1283 = vsel %vm1268, %v1280, %v1282
      %v1284 = vrot.slane %v391, 2
      %v1285 = vrot.slane %v392, 2
      %v1286 = vsel %vm1268, %v1284, %v1285
      %v1287 = vrot.slane %v452, 2
      %v1288 = vsel %vm1268, %v1285, %v1287
      %v1289 = vrot.slane %v393, 2
      %v1290 = vrot.slane %v394, 2
      %v1291 = vsel %vm1268, %v1289, %v1290
      %v1292 = vrot.slane %v453, 2
      %v1293 = vsel %vm1268, %v1290, %v1292
      %v1294 = vrot.slane %v395, 2
      %v1295 = vrot.slane %v396, 2
      %v1296 = vsel %vm1268, %v1294, %v1295
      %v1297 = vrot.slane %v454, 2
      %v1298 = vsel %vm1268, %v1295, %v1297
      %v1299 = vrot.slane %v397, 2
      %v1300 = vrot.slane %v398, 2
      %v1301 = vsel %vm1268, %v1299, %v1300
      %v1302 = vrot.slane %v455, 2
      %v1303 = vsel %vm1268, %v1300, %v1302
      %v1304 = vrot.slane %v399, 2
      %v1305 = vrot.slane %v400, 2
      %v1306 = vsel %vm1268, %v1304, %v1305
      %v1307 = vrot.slane %v456, 2
      %v1308 = vsel %vm1268, %v1305, %v1307
      %v1309 = vrot.slane %v401, 2
      %v1310 = vrot.slane %v402, 2
      %v1311 = vsel %vm1268, %v1309, %v1310
      %v1312 = vrot.slane %v457, 2
      %v1313 = vsel %vm1268, %v1310, %v1312
      %v1314 = vrot.slane %v403, 2
      %v1315 = vrot.slane %v404, 2
      %v1316 = vsel %vm1268, %v1314, %v1315
      %v1317 = vrot.slane %v458, 2
      %v1318 = vsel %vm1268, %v1315, %v1317
      %v1319 = vrot.slane %v405, 2
      %v1320 = vrot.slane %v406, 2
      %v1321 = vsel %vm1268, %v1319, %v1320
      %v1322 = vrot.slane %v459, 2
      %v1323 = vsel %vm1268, %v1320, %v1322
      %v1324 = vrot.slane %v407, 2
      %v1325 = vrot.slane %v408, 2
      %v1326 = vsel %vm1268, %v1324, %v1325
      %v1327 = vrot.slane %v460, 2
      %v1328 = vsel %vm1268, %v1325, %v1327
      %v1329 = vrot.slane %v409, 2
      %v1330 = vrot.slane %v410, 2
      %v1331 = vsel %vm1268, %v1329, %v1330
      %v1332 = vrot.slane %v461, 2
      %v1333 = vsel %vm1268, %v1330, %v1332
      %v1334 = vrot.slane %v411, 2
      %v1335 = vrot.slane %v412, 2
      %v1336 = vsel %vm1268, %v1334, %v1335
      %v1337 = vrot.slane %v462, 2
      %v1338 = vsel %vm1268, %v1335, %v1337
      %v1339 = vrot.slane %v413, 2
      %v1340 = vrot.slane %v414, 2
      %v1341 = vsel %vm1268, %v1339, %v1340
      %v1342 = vrot.slane %v463, 2
      %v1343 = vsel %vm1268, %v1340, %v1342
      %v1344 = vrot.slane %v415, 2
      %v1345 = vrot.slane %v416, 2
      %v1346 = vsel %vm1268, %v1344, %v1345
      %v1347 = vrot.slane %v464, 2
      %v1348 = vsel %vm1268, %v1345, %v1347
      %1349 = vrot.lane.b32.xlu0 %v1271, 72
      %v1350 = vpop.permute.xlu0 %1349
      %1351 = vrot.lane.b32.xlu0 %v1273, 72
      %v1352 = vpop.permute.xlu0 %1351
      %1353 = vrot.lane.b32.xlu0 %v1276, 72
      %v1354 = vpop.permute.xlu0 %1353
      %1355 = vrot.lane.b32.xlu0 %v1278, 72
      %v1356 = vpop.permute.xlu0 %1355
      %1357 = vrot.lane.b32.xlu0 %v1281, 72
      %v1358 = vpop.permute.xlu0 %1357
      %1359 = vrot.lane.b32.xlu0 %v1283, 72
      %v1360 = vpop.permute.xlu0 %1359
      %1361 = vrot.lane.b32.xlu0 %v1286, 72
      %v1362 = vpop.permute.xlu0 %1361
      %1363 = vrot.lane.b32.xlu0 %v1288, 72
      %v1364 = vpop.permute.xlu0 %1363
      %1365 = vrot.lane.b32.xlu0 %v1291, 72
      %v1366 = vpop.permute.xlu0 %1365
      %1367 = vrot.lane.b32.xlu0 %v1293, 72
      %v1368 = vpop.permute.xlu0 %1367
      %1369 = vrot.lane.b32.xlu0 %v1296, 72
      %v1370 = vpop.permute.xlu0 %1369
      %1371 = vrot.lane.b32.xlu0 %v1298, 72
      %v1372 = vpop.permute.xlu0 %1371
      %1373 = vrot.lane.b32.xlu0 %v1301, 72
      %v1374 = vpop.permute.xlu0 %1373
      %1375 = vrot.lane.b32.xlu0 %v1303, 72
      %v1376 = vpop.permute.xlu0 %1375
      %1377 = vrot.lane.b32.xlu0 %v1306, 72
      %v1378 = vpop.permute.xlu0 %1377
      %1379 = vrot.lane.b32.xlu0 %v1308, 72
      %v1380 = vpop.permute.xlu0 %1379
      %1381 = vrot.lane.b32.xlu0 %v1311, 72
      %v1382 = vpop.permute.xlu0 %1381
      %1383 = vrot.lane.b32.xlu0 %v1313, 72
      %v1384 = vpop.permute.xlu0 %1383
      %1385 = vrot.lane.b32.xlu0 %v1316, 72
      %v1386 = vpop.permute.xlu0 %1385
      %1387 = vrot.lane.b32.xlu0 %v1318, 72
      %v1388 = vpop.permute.xlu0 %1387
      %1389 = vrot.lane.b32.xlu0 %v1321, 72
      %v1390 = vpop.permute.xlu0 %1389
      %1391 = vrot.lane.b32.xlu0 %v1323, 72
      %v1392 = vpop.permute.xlu0 %1391
      %1393 = vrot.lane.b32.xlu0 %v1326, 72
      %v1394 = vpop.permute.xlu0 %1393
      %1395 = vrot.lane.b32.xlu0 %v1328, 72
      %v1396 = vpop.permute.xlu0 %1395
      %1397 = vrot.lane.b32.xlu0 %v1331, 72
      %v1398 = vpop.permute.xlu0 %1397
      %1399 = vrot.lane.b32.xlu0 %v1333, 72
      %v1400 = vpop.permute.xlu0 %1399
      %1401 = vrot.lane.b32.xlu0 %v1336, 72
      %v1402 = vpop.permute.xlu0 %1401
      %1403 = vrot.lane.b32.xlu0 %v1338, 72
      %v1404 = vpop.permute.xlu0 %1403
      %1405 = vrot.lane.b32.xlu0 %v1341, 72
      %v1406 = vpop.permute.xlu0 %1405
      %1407 = vrot.lane.b32.xlu0 %v1343, 72
      %v1408 = vpop.permute.xlu0 %1407
      %1409 = vrot.lane.b32.xlu0 %v1346, 72
      %v1410 = vpop.permute.xlu0 %1409
      %1411 = vrot.lane.b32.xlu0 %v1348, 72
      %v1412 = vpop.permute.xlu0 %1411
      %vm1413 = vcmask 408576
      %v1415 = vsel %vm1413, %v385, %v787
      %v1417 = vsel %vm1413, %v386, %v789
      %v1419 = vsel %vm1413, %v387, %v791
      %v1421 = vsel %vm1413, %v388, %v793
      %v1423 = vsel %vm1413, %v389, %v795
      %v1425 = vsel %vm1413, %v390, %v797
      %v1427 = vsel %vm1413, %v391, %v799
      %v1429 = vsel %vm1413, %v392, %v801
      %v1431 = vsel %vm1413, %v393, %v803
      %v1433 = vsel %vm1413, %v394, %v805
      %v1435 = vsel %vm1413, %v395, %v807
      %v1437 = vsel %vm1413, %v396, %v809
      %v1439 = vsel %vm1413, %v397, %v811
      %v1441 = vsel %vm1413, %v398, %v813
      %v1443 = vsel %vm1413, %v399, %v815
      %v1445 = vsel %vm1413, %v400, %v817
      %v1447 = vsel %vm1413, %v401, %v819
      %v1449 = vsel %vm1413, %v402, %v821
      %v1451 = vsel %vm1413, %v403, %v823
      %v1453 = vsel %vm1413, %v404, %v825
      %v1455 = vsel %vm1413, %v405, %v827
      %v1457 = vsel %vm1413, %v406, %v829
      %v1459 = vsel %vm1413, %v407, %v831
      %v1461 = vsel %vm1413, %v408, %v833
      %v1463 = vsel %vm1413, %v409, %v835
      %v1465 = vsel %vm1413, %v410, %v837
      %v1467 = vsel %vm1413, %v411, %v839
      %v1469 = vsel %vm1413, %v412, %v841
      %v1471 = vsel %vm1413, %v413, %v843
      %v1473 = vsel %vm1413, %v414, %v845
      %v1475 = vsel %vm1413, %v415, %v847
      %v1477 = vsel %vm1413, %v416, %v849
      %vm1478 = vcmask 818176
      %v1480 = vsel %vm1478, %v1415, %v932
      %v1483 = vsel %vm1478, %v1417, %v934
      %v1486 = vsel %vm1478, %v1419, %v936
      %v1489 = vsel %vm1478, %v1421, %v938
      %v1492 = vsel %vm1478, %v1423, %v940
      %v1495 = vsel %vm1478, %v1425, %v942
      %v1498 = vsel %vm1478, %v1427, %v944
      %v1501 = vsel %vm1478, %v1429, %v946
      %v1504 = vsel %vm1478, %v1431, %v948
      %v1507 = vsel %vm1478, %v1433, %v950
      %v1510 = vsel %vm1478, %v1435, %v952
      %v1513 = vsel %vm1478, %v1437, %v954
      %v1516 = vsel %vm1478, %v1439, %v956
      %v1519 = vsel %vm1478, %v1441, %v958
      %v1522 = vsel %vm1478, %v1443, %v960
      %v1525 = vsel %vm1478, %v1445, %v962
      %v1528 = vsel %vm1478, %v1447, %v964
      %v1531 = vsel %vm1478, %v1449, %v966
      %v1534 = vsel %vm1478, %v1451, %v968
      %v1537 = vsel %vm1478, %v1453, %v970
      %v1540 = vsel %vm1478, %v1455, %v972
      %v1543 = vsel %vm1478, %v1457, %v974
      %v1546 = vsel %vm1478, %v1459, %v976
      %v1549 = vsel %vm1478, %v1461, %v978
      %v1552 = vsel %vm1478, %v1463, %v980
      %v1555 = vsel %vm1478, %v1465, %v982
      %v1558 = vsel %vm1478, %v1467, %v984
      %v1561 = vsel %vm1478, %v1469, %v986
      %v1564 = vsel %vm1478, %v1471, %v988
      %v1567 = vsel %vm1478, %v1473, %v990
      %v1570 = vsel %vm1478, %v1475, %v992
      %v1573 = vsel %vm1478, %v1477, %v994
      %vm1575 = vcmask 179200
      %v1577 = vsel %vm1575, %v932, %v1205
      %v1579 = vsel %vm1575, %v934, %v1207
      %v1581 = vsel %vm1575, %v936, %v1209
      %v1583 = vsel %vm1575, %v938, %v1211
      %v1585 = vsel %vm1575, %v940, %v1213
      %v1587 = vsel %vm1575, %v942, %v1215
      %v1589 = vsel %vm1575, %v944, %v1217
      %v1591 = vsel %vm1575, %v946, %v1219
      %v1593 = vsel %vm1575, %v948, %v1221
      %v1595 = vsel %vm1575, %v950, %v1223
      %v1597 = vsel %vm1575, %v952, %v1225
      %v1599 = vsel %vm1575, %v954, %v1227
      %v1601 = vsel %vm1575, %v956, %v1229
      %v1603 = vsel %vm1575, %v958, %v1231
      %v1605 = vsel %vm1575, %v960, %v1233
      %v1607 = vsel %vm1575, %v962, %v1235
      %v1609 = vsel %vm1575, %v964, %v1237
      %v1611 = vsel %vm1575, %v966, %v1239
      %v1613 = vsel %vm1575, %v968, %v1241
      %v1615 = vsel %vm1575, %v970, %v1243
      %v1617 = vsel %vm1575, %v972, %v1245
      %v1619 = vsel %vm1575, %v974, %v1247
      %v1621 = vsel %vm1575, %v976, %v1249
      %v1623 = vsel %vm1575, %v978, %v1251
      %v1625 = vsel %vm1575, %v980, %v1253
      %v1627 = vsel %vm1575, %v982, %v1255
      %v1629 = vsel %vm1575, %v984, %v1257
      %v1631 = vsel %vm1575, %v986, %v1259
      %v1633 = vsel %vm1575, %v988, %v1261
      %v1635 = vsel %vm1575, %v990, %v1263
      %v1637 = vsel %vm1575, %v992, %v1265
      %v1639 = vsel %vm1575, %v994, %v1267
      %vm1640 = vcmask 588800
      %v1642 = vsel %vm1640, %v1577, %v1350
      %v1644 = vsel %vm1640, %v1579, %v1352
      %v1646 = vsel %vm1640, %v1581, %v1354
      %v1648 = vsel %vm1640, %v1583, %v1356
      %v1650 = vsel %vm1640, %v1585, %v1358
      %v1652 = vsel %vm1640, %v1587, %v1360
      %v1654 = vsel %vm1640, %v1589, %v1362
      %v1656 = vsel %vm1640, %v1591, %v1364
      %v1658 = vsel %vm1640, %v1593, %v1366
      %v1660 = vsel %vm1640, %v1595, %v1368
      %v1662 = vsel %vm1640, %v1597, %v1370
      %v1664 = vsel %vm1640, %v1599, %v1372
      %v1666 = vsel %vm1640, %v1601, %v1374
      %v1668 = vsel %vm1640, %v1603, %v1376
      %v1670 = vsel %vm1640, %v1605, %v1378
      %v1672 = vsel %vm1640, %v1607, %v1380
      %v1674 = vsel %vm1640, %v1609, %v1382
      %v1676 = vsel %vm1640, %v1611, %v1384
      %v1678 = vsel %vm1640, %v1613, %v1386
      %v1680 = vsel %vm1640, %v1615, %v1388
      %v1682 = vsel %vm1640, %v1617, %v1390
      %v1684 = vsel %vm1640, %v1619, %v1392
      %v1686 = vsel %vm1640, %v1621, %v1394
      %v1688 = vsel %vm1640, %v1623, %v1396
      %v1690 = vsel %vm1640, %v1625, %v1398
      %v1692 = vsel %vm1640, %v1627, %v1400
      %v1694 = vsel %vm1640, %v1629, %v1402
      %v1696 = vsel %vm1640, %v1631, %v1404
      %v1698 = vsel %vm1640, %v1633, %v1406
      %v1700 = vsel %vm1640, %v1635, %v1408
      %v1702 = vsel %vm1640, %v1637, %v1410
      %v1704 = vsel %vm1640, %v1639, %v1412
      %v1705 = vld [vmem:[%s1] sm:$0xf]
      %v1706 = vld [vmem:[%s1 + $0x4] sm:$0xf]
      %v1707 = vld [vmem:[%s1 + $0x8] sm:$0xf]
      %v1708 = vld [vmem:[%s1 + $0xc] sm:$0xf]
      %v1709 = vld [vmem:[%s1 + $0x10] sm:$0xf]
      %v1710 = vld [vmem:[%s1 + $0x14] sm:$0xf]
      %v1711 = vld [vmem:[%s1 + $0x18] sm:$0xf]
      %v1712 = vld [vmem:[%s1 + $0x1c] sm:$0xf]
      %v1713 = vld [vmem:[%s1 + $0x20] sm:$0xf]
      %v1714 = vld [vmem:[%s1 + $0x24] sm:$0xf]
      %v1715 = vld [vmem:[%s1 + $0x28] sm:$0xf]
      %v1716 = vld [vmem:[%s1 + $0x2c] sm:$0xf]
      %v1717 = vld [vmem:[%s1 + $0x30] sm:$0xf]
      %v1718 = vld [vmem:[%s1 + $0x34] sm:$0xf]
      %v1719 = vld [vmem:[%s1 + $0x38] sm:$0xf]
      %v1720 = vld [vmem:[%s1 + $0x3c] sm:$0xf]
      %v1721 = vld [vmem:[%s1 + $0x40] sm:$0xf]
      %v1722 = vld [vmem:[%s1 + $0x44] sm:$0xf]
      %v1723 = vld [vmem:[%s1 + $0x48] sm:$0xf]
      %v1724 = vld [vmem:[%s1 + $0x4c] sm:$0xf]
      %v1725 = vld [vmem:[%s1 + $0x50] sm:$0xf]
      %v1726 = vld [vmem:[%s1 + $0x54] sm:$0xf]
      %v1727 = vld [vmem:[%s1 + $0x58] sm:$0xf]
      %v1728 = vld [vmem:[%s1 + $0x5c] sm:$0xf]
      %v1729 = vld [vmem:[%s1 + $0x60] sm:$0xf]
      %v1730 = vld [vmem:[%s1 + $0x64] sm:$0xf]
      %v1731 = vld [vmem:[%s1 + $0x68] sm:$0xf]
      %v1732 = vld [vmem:[%s1 + $0x6c] sm:$0xf]
      %v1733 = vld [vmem:[%s1 + $0x70] sm:$0xf]
      %v1734 = vld [vmem:[%s1 + $0x74] sm:$0xf]
      %v1735 = vld [vmem:[%s1 + $0x78] sm:$0xf]
      %v1736 = vld [vmem:[%s1 + $0x7c] sm:$0x1]
      %v1769 = vunpack.c.l.b16 %v1705
      %v1770 = vunpack.c.l.b16 %v1706
      %v1771 = vunpack.c.l.b16 %v1707
      %v1772 = vunpack.c.l.b16 %v1708
      %v1773 = vunpack.c.l.b16 %v1709
      %v1774 = vunpack.c.l.b16 %v1710
      %v1775 = vunpack.c.l.b16 %v1711
      %v1776 = vunpack.c.l.b16 %v1712
      %v1777 = vunpack.c.l.b16 %v1713
      %v1778 = vunpack.c.l.b16 %v1714
      %v1779 = vunpack.c.l.b16 %v1715
      %v1780 = vunpack.c.l.b16 %v1716
      %v1781 = vunpack.c.l.b16 %v1717
      %v1782 = vunpack.c.l.b16 %v1718
      %v1783 = vunpack.c.l.b16 %v1719
      %v1784 = vunpack.c.l.b16 %v1720
      %v1785 = vunpack.c.l.b16 %v1721
      %v1786 = vunpack.c.l.b16 %v1722
      %v1787 = vunpack.c.l.b16 %v1723
      %v1788 = vunpack.c.l.b16 %v1724
      %v1789 = vunpack.c.l.b16 %v1725
      %v1790 = vunpack.c.l.b16 %v1726
      %v1791 = vunpack.c.l.b16 %v1727
      %v1792 = vunpack.c.l.b16 %v1728
      %v1793 = vunpack.c.l.b16 %v1729
      %v1794 = vunpack.c.l.b16 %v1730
      %v1795 = vunpack.c.l.b16 %v1731
      %v1796 = vunpack.c.l.b16 %v1732
      %v1797 = vunpack.c.l.b16 %v1733
      %v1798 = vunpack.c.l.b16 %v1734
      %v1799 = vunpack.c.l.b16 %v1735
      %v1800 = vunpack.c.l.b16 %v1736
      %v1801 = vpack.c.b16 %v1770, %v1769
      %v1802 = vpack.c.b16 %v1772, %v1771
      %v1803 = vpack.c.b16 %v1774, %v1773
      %v1804 = vpack.c.b16 %v1776, %v1775
      %v1805 = vpack.c.b16 %v1778, %v1777
      %v1806 = vpack.c.b16 %v1780, %v1779
      %v1807 = vpack.c.b16 %v1782, %v1781
      %v1808 = vpack.c.b16 %v1784, %v1783
      %v1809 = vpack.c.b16 %v1786, %v1785
      %v1810 = vpack.c.b16 %v1788, %v1787
      %v1811 = vpack.c.b16 %v1790, %v1789
      %v1812 = vpack.c.b16 %v1792, %v1791
      %v1813 = vpack.c.b16 %v1794, %v1793
      %v1814 = vpack.c.b16 %v1796, %v1795
      %v1815 = vpack.c.b16 %v1798, %v1797
      %v1816 = vpack.c.b16 %v1800, %v1799
      %vm1832 = vcmask 998400
      %v1833 = vsel %vm1832, %v1642, 0
      %v1835 = vsel %vm1832, %v1644, 0
      %v1837 = vsel %vm1832, %v1646, 0
      %v1839 = vsel %vm1832, %v1648, 0
      %v1841 = vsel %vm1832, %v1650, 0
      %v1843 = vsel %vm1832, %v1652, 0
      %v1845 = vsel %vm1832, %v1654, 0
      %v1847 = vsel %vm1832, %v1656, 0
      %v1849 = vsel %vm1832, %v1658, 0
      %v1851 = vsel %vm1832, %v1660, 0
      %v1853 = vsel %vm1832, %v1662, 0
      %v1855 = vsel %vm1832, %v1664, 0
      %v1857 = vsel %vm1832, %v1666, 0
      %v1859 = vsel %vm1832, %v1668, 0
      %v1861 = vsel %vm1832, %v1670, 0
      %v1863 = vsel %vm1832, %v1672, 0
      %v1865 = vsel %vm1832, %v1674, 0
      %v1867 = vsel %vm1832, %v1676, 0
      %v1869 = vsel %vm1832, %v1678, 0
      %v1871 = vsel %vm1832, %v1680, 0
      %v1873 = vsel %vm1832, %v1682, 0
      %v1875 = vsel %vm1832, %v1684, 0
      %v1877 = vsel %vm1832, %v1686, 0
      %v1879 = vsel %vm1832, %v1688, 0
      %v1881 = vsel %vm1832, %v1690, 0
      %v1883 = vsel %vm1832, %v1692, 0
      %v1885 = vsel %vm1832, %v1694, 0
      %v1887 = vsel %vm1832, %v1696, 0
      %v1889 = vsel %vm1832, %v1698, 0
      %v1891 = vsel %vm1832, %v1700, 0
      %v1893 = vsel %vm1832, %v1702, 0
      %v1895 = vsel %vm1832, %v1704, 0
      %vm1897 = vcmask 1044480
      %v1899 = vsel %vm1897, %v1816, 0
      %1901 = vmatpush.bf16.msra.mxu0 %v1808
      %1902 = vmatpush.bf16.msra.mxu0 %v1807
      %1903 = vmatpush.bf16.msra.mxu0 %v1806
      %1904 = vmatpush.bf16.msra.mxu0 %v1805
      %1905 = vmatpush.bf16.msra.mxu0 %v1804
      %1906 = vmatpush.bf16.msra.mxu0 %v1803
      %1907 = vmatpush.bf16.msra.mxu0 %v1802
      %1908 = vmatpush.bf16.msra.mxu0 %v1801
      %1909 = vmatmul.bf16.gmra.mxu0 %v1480
      %v1910 = vpop.f32.mrf.mxu0
      %v1911 = vadd.f32 0.0, %v1910
      %v1912 = vpop.f32.mrf.mxu0
      %v1913 = vadd.f32 0.0, %v1912
      %1914 = vmatmul.bf16.gmra.mxu0 %v1483
      %v1915 = vpop.f32.mrf.mxu0
      %v1916 = vadd.f32 0.0, %v1915
      %v1917 = vpop.f32.mrf.mxu0
      %v1918 = vadd.f32 0.0, %v1917
      %1919 = vmatmul.bf16.gmra.mxu0 %v1486
      %v1920 = vpop.f32.mrf.mxu0
      %v1921 = vadd.f32 0.0, %v1920
      %v1922 = vpop.f32.mrf.mxu0
      %v1923 = vadd.f32 0.0, %v1922
      %1924 = vmatmul.bf16.gmra.mxu0 %v1489
      %v1925 = vpop.f32.mrf.mxu0
      %v1926 = vadd.f32 0.0, %v1925
      %v1927 = vpop.f32.mrf.mxu0
      %v1928 = vadd.f32 0.0, %v1927
      %1929 = vmatmul.bf16.gmra.mxu0 %v1492
      %v1930 = vpop.f32.mrf.mxu0
      %v1931 = vadd.f32 0.0, %v1930
      %v1932 = vpop.f32.mrf.mxu0
      %v1933 = vadd.f32 0.0, %v1932
      %1934 = vmatmul.bf16.gmra.mxu0 %v1495
      %v1935 = vpop.f32.mrf.mxu0
      %v1936 = vadd.f32 0.0, %v1935
      %v1937 = vpop.f32.mrf.mxu0
      %v1938 = vadd.f32 0.0, %v1937
      %1939 = vmatmul.bf16.gmra.mxu0 %v1498
      %v1940 = vpop.f32.mrf.mxu0
      %v1941 = vadd.f32 0.0, %v1940
      %v1942 = vpop.f32.mrf.mxu0
      %v1943 = vadd.f32 0.0, %v1942
      %1944 = vmatmul.bf16.gmra.mxu0 %v1501
      %v1945 = vpop.f32.mrf.mxu0
      %v1946 = vadd.f32 0.0, %v1945
      %v1947 = vpop.f32.mrf.mxu0
      %v1948 = vadd.f32 0.0, %v1947
      %1949 = vmatmul.bf16.gmra.mxu0 %v1504
      %v1950 = vpop.f32.mrf.mxu0
      %v1951 = vadd.f32 0.0, %v1950
      %v1952 = vpop.f32.mrf.mxu0
      %v1953 = vadd.f32 0.0, %v1952
      %1954 = vmatmul.bf16.gmra.mxu0 %v1507
      %v1955 = vpop.f32.mrf.mxu0
      %v1956 = vadd.f32 0.0, %v1955
      %v1957 = vpop.f32.mrf.mxu0
      %v1958 = vadd.f32 0.0, %v1957
      %1959 = vmatmul.bf16.gmra.mxu0 %v1510
      %v1960 = vpop.f32.mrf.mxu0
      %v1961 = vadd.f32 0.0, %v1960
      %v1962 = vpop.f32.mrf.mxu0
      %v1963 = vadd.f32 0.0, %v1962
      %1964 = vmatmul.bf16.gmra.mxu0 %v1513
      %v1965 = vpop.f32.mrf.mxu0
      %v1966 = vadd.f32 0.0, %v1965
      %v1967 = vpop.f32.mrf.mxu0
      %v1968 = vadd.f32 0.0, %v1967
      %1969 = vmatmul.bf16.gmra.mxu0 %v1516
      %v1970 = vpop.f32.mrf.mxu0
      %v1971 = vadd.f32 0.0, %v1970
      %v1972 = vpop.f32.mrf.mxu0
      %v1973 = vadd.f32 0.0, %v1972
      %1974 = vmatmul.bf16.gmra.mxu0 %v1519
      %v1975 = vpop.f32.mrf.mxu0
      %v1976 = vadd.f32 0.0, %v1975
      %v1977 = vpop.f32.mrf.mxu0
      %v1978 = vadd.f32 0.0, %v1977
      %1979 = vmatmul.bf16.gmra.mxu0 %v1522
      %v1980 = vpop.f32.mrf.mxu0
      %v1981 = vadd.f32 0.0, %v1980
      %v1982 = vpop.f32.mrf.mxu0
      %v1983 = vadd.f32 0.0, %v1982
      %1984 = vmatmul.bf16.gmra.mxu0 %v1525
      %v1985 = vpop.f32.mrf.mxu0
      %v1986 = vadd.f32 0.0, %v1985
      %v1987 = vpop.f32.mrf.mxu0
      %v1988 = vadd.f32 0.0, %v1987
      %1989 = vmatmul.bf16.gmra.mxu0 %v1528
      %v1990 = vpop.f32.mrf.mxu0
      %v1991 = vadd.f32 0.0, %v1990
      %v1992 = vpop.f32.mrf.mxu0
      %v1993 = vadd.f32 0.0, %v1992
      %1994 = vmatmul.bf16.gmra.mxu0 %v1531
      %v1995 = vpop.f32.mrf.mxu0
      %v1996 = vadd.f32 0.0, %v1995
      %v1997 = vpop.f32.mrf.mxu0
      %v1998 = vadd.f32 0.0, %v1997
      %1999 = vmatmul.bf16.gmra.mxu0 %v1534
      %v2000 = vpop.f32.mrf.mxu0
      %v2001 = vadd.f32 0.0, %v2000
      %v2002 = vpop.f32.mrf.mxu0
      %v2003 = vadd.f32 0.0, %v2002
      %2004 = vmatmul.bf16.gmra.mxu0 %v1537
      %v2005 = vpop.f32.mrf.mxu0
      %v2006 = vadd.f32 0.0, %v2005
      %v2007 = vpop.f32.mrf.mxu0
      %v2008 = vadd.f32 0.0, %v2007
      %2009 = vmatmul.bf16.gmra.mxu0 %v1540
      %v2010 = vpop.f32.mrf.mxu0
      %v2011 = vadd.f32 0.0, %v2010
      %v2012 = vpop.f32.mrf.mxu0
      %v2013 = vadd.f32 0.0, %v2012
      %2014 = vmatmul.bf16.gmra.mxu0 %v1543
      %v2015 = vpop.f32.mrf.mxu0
      %v2016 = vadd.f32 0.0, %v2015
      %v2017 = vpop.f32.mrf.mxu0
      %v2018 = vadd.f32 0.0, %v2017
      %2019 = vmatmul.bf16.gmra.mxu0 %v1546
      %v2020 = vpop.f32.mrf.mxu0
      %v2021 = vadd.f32 0.0, %v2020
      %v2022 = vpop.f32.mrf.mxu0
      %v2023 = vadd.f32 0.0, %v2022
      %2024 = vmatmul.bf16.gmra.mxu0 %v1549
      %v2025 = vpop.f32.mrf.mxu0
      %v2026 = vadd.f32 0.0, %v2025
      %v2027 = vpop.f32.mrf.mxu0
      %v2028 = vadd.f32 0.0, %v2027
      %2029 = vmatmul.bf16.gmra.mxu0 %v1552
      %v2030 = vpop.f32.mrf.mxu0
      %v2031 = vadd.f32 0.0, %v2030
      %v2032 = vpop.f32.mrf.mxu0
      %v2033 = vadd.f32 0.0, %v2032
      %2034 = vmatmul.bf16.gmra.mxu0 %v1555
      %v2035 = vpop.f32.mrf.mxu0
      %v2036 = vadd.f32 0.0, %v2035
      %v2037 = vpop.f32.mrf.mxu0
      %v2038 = vadd.f32 0.0, %v2037
      %2039 = vmatmul.bf16.gmra.mxu0 %v1558
      %v2040 = vpop.f32.mrf.mxu0
      %v2041 = vadd.f32 0.0, %v2040
      %v2042 = vpop.f32.mrf.mxu0
      %v2043 = vadd.f32 0.0, %v2042
      %2044 = vmatmul.bf16.gmra.mxu0 %v1561
      %v2045 = vpop.f32.mrf.mxu0
      %v2046 = vadd.f32 0.0, %v2045
      %v2047 = vpop.f32.mrf.mxu0
      %v2048 = vadd.f32 0.0, %v2047
      %2049 = vmatmul.bf16.gmra.mxu0 %v1564
      %v2050 = vpop.f32.mrf.mxu0
      %v2051 = vadd.f32 0.0, %v2050
      %v2052 = vpop.f32.mrf.mxu0
      %v2053 = vadd.f32 0.0, %v2052
      %2054 = vmatmul.bf16.gmra.mxu0 %v1567
      %v2055 = vpop.f32.mrf.mxu0
      %v2056 = vadd.f32 0.0, %v2055
      %v2057 = vpop.f32.mrf.mxu0
      %v2058 = vadd.f32 0.0, %v2057
      %2059 = vmatmul.bf16.gmra.mxu0 %v1570
      %v2060 = vpop.f32.mrf.mxu0
      %v2061 = vadd.f32 0.0, %v2060
      %v2062 = vpop.f32.mrf.mxu0
      %v2063 = vadd.f32 0.0, %v2062
      %2064 = vmatmul.bf16.gmra.mxu0 %v1573
      %v2065 = vpop.f32.mrf.mxu0
      %v2066 = vadd.f32 0.0, %v2065
      %v2067 = vpop.f32.mrf.mxu0
      %v2068 = vadd.f32 0.0, %v2067
      %2069 = vdwg.mxu0
      %2070 = vmatpush.bf16.msra.mxu0 %v1899
      %2071 = vmatpush.bf16.msra.mxu0 %v1815
      %2072 = vmatpush.bf16.msra.mxu0 %v1814
      %2073 = vmatpush.bf16.msra.mxu0 %v1813
      %2074 = vmatpush.bf16.msra.mxu0 %v1812
      %2075 = vmatpush.bf16.msra.mxu0 %v1811
      %2076 = vmatpush.bf16.msra.mxu0 %v1810
      %2077 = vmatpush.bf16.msra.mxu0 %v1809
      %2078 = vmatmul.bf16.gmra.mxu0 %v1833
      %v2079 = vpop.f32.mrf.mxu0
      %v2080 = vadd.f32 %v1911, %v2079
      %v2081 = vpop.f32.mrf.mxu0
      %v2082 = vadd.f32 %v1913, %v2081
      %2083 = vmatmul.bf16.gmra.mxu0 %v1835
      %v2084 = vpop.f32.mrf.mxu0
      %v2085 = vadd.f32 %v1916, %v2084
      %v2086 = vpop.f32.mrf.mxu0
      %v2087 = vadd.f32 %v1918, %v2086
      %2088 = vmatmul.bf16.gmra.mxu0 %v1837
      %v2089 = vpop.f32.mrf.mxu0
      %v2090 = vadd.f32 %v1921, %v2089
      %v2091 = vpop.f32.mrf.mxu0
      %v2092 = vadd.f32 %v1923, %v2091
      %2093 = vmatmul.bf16.gmra.mxu0 %v1839
      %v2094 = vpop.f32.mrf.mxu0
      %v2095 = vadd.f32 %v1926, %v2094
      %v2096 = vpop.f32.mrf.mxu0
      %v2097 = vadd.f32 %v1928, %v2096
      %2098 = vmatmul.bf16.gmra.mxu0 %v1841
      %v2099 = vpop.f32.mrf.mxu0
      %v2100 = vadd.f32 %v1931, %v2099
      %v2101 = vpop.f32.mrf.mxu0
      %v2102 = vadd.f32 %v1933, %v2101
      %2103 = vmatmul.bf16.gmra.mxu0 %v1843
      %v2104 = vpop.f32.mrf.mxu0
      %v2105 = vadd.f32 %v1936, %v2104
      %v2106 = vpop.f32.mrf.mxu0
      %v2107 = vadd.f32 %v1938, %v2106
      %2108 = vmatmul.bf16.gmra.mxu0 %v1845
      %v2109 = vpop.f32.mrf.mxu0
      %v2110 = vadd.f32 %v1941, %v2109
      %v2111 = vpop.f32.mrf.mxu0
      %v2112 = vadd.f32 %v1943, %v2111
      %2113 = vmatmul.bf16.gmra.mxu0 %v1847
      %v2114 = vpop.f32.mrf.mxu0
      %v2115 = vadd.f32 %v1946, %v2114
      %v2116 = vpop.f32.mrf.mxu0
      %v2117 = vadd.f32 %v1948, %v2116
      %2118 = vmatmul.bf16.gmra.mxu0 %v1849
      %v2119 = vpop.f32.mrf.mxu0
      %v2120 = vadd.f32 %v1951, %v2119
      %v2121 = vpop.f32.mrf.mxu0
      %v2122 = vadd.f32 %v1953, %v2121
      %2123 = vmatmul.bf16.gmra.mxu0 %v1851
      %v2124 = vpop.f32.mrf.mxu0
      %v2125 = vadd.f32 %v1956, %v2124
      %v2126 = vpop.f32.mrf.mxu0
      %v2127 = vadd.f32 %v1958, %v2126
      %2128 = vmatmul.bf16.gmra.mxu0 %v1853
      %v2129 = vpop.f32.mrf.mxu0
      %v2130 = vadd.f32 %v1961, %v2129
      %v2131 = vpop.f32.mrf.mxu0
      %v2132 = vadd.f32 %v1963, %v2131
      %2133 = vmatmul.bf16.gmra.mxu0 %v1855
      %v2134 = vpop.f32.mrf.mxu0
      %v2135 = vadd.f32 %v1966, %v2134
      %v2136 = vpop.f32.mrf.mxu0
      %v2137 = vadd.f32 %v1968, %v2136
      %2138 = vmatmul.bf16.gmra.mxu0 %v1857
      %v2139 = vpop.f32.mrf.mxu0
      %v2140 = vadd.f32 %v1971, %v2139
      %v2141 = vpop.f32.mrf.mxu0
      %v2142 = vadd.f32 %v1973, %v2141
      %2143 = vmatmul.bf16.gmra.mxu0 %v1859
      %v2144 = vpop.f32.mrf.mxu0
      %v2145 = vadd.f32 %v1976, %v2144
      %v2146 = vpop.f32.mrf.mxu0
      %v2147 = vadd.f32 %v1978, %v2146
      %2148 = vmatmul.bf16.gmra.mxu0 %v1861
      %v2149 = vpop.f32.mrf.mxu0
      %v2150 = vadd.f32 %v1981, %v2149
      %v2151 = vpop.f32.mrf.mxu0
      %v2152 = vadd.f32 %v1983, %v2151
      %2153 = vmatmul.bf16.gmra.mxu0 %v1863
      %v2154 = vpop.f32.mrf.mxu0
      %v2155 = vadd.f32 %v1986, %v2154
      %v2156 = vpop.f32.mrf.mxu0
      %v2157 = vadd.f32 %v1988, %v2156
      %2158 = vmatmul.bf16.gmra.mxu0 %v1865
      %v2159 = vpop.f32.mrf.mxu0
      %v2160 = vadd.f32 %v1991, %v2159
      %v2161 = vpop.f32.mrf.mxu0
      %v2162 = vadd.f32 %v1993, %v2161
      %2163 = vmatmul.bf16.gmra.mxu0 %v1867
      %v2164 = vpop.f32.mrf.mxu0
      %v2165 = vadd.f32 %v1996, %v2164
      %v2166 = vpop.f32.mrf.mxu0
      %v2167 = vadd.f32 %v1998, %v2166
      %2168 = vmatmul.bf16.gmra.mxu0 %v1869
      %v2169 = vpop.f32.mrf.mxu0
      %v2170 = vadd.f32 %v2001, %v2169
      %v2171 = vpop.f32.mrf.mxu0
      %v2172 = vadd.f32 %v2003, %v2171
      %2173 = vmatmul.bf16.gmra.mxu0 %v1871
      %v2174 = vpop.f32.mrf.mxu0
      %v2175 = vadd.f32 %v2006, %v2174
      %v2176 = vpop.f32.mrf.mxu0
      %v2177 = vadd.f32 %v2008, %v2176
      %2178 = vmatmul.bf16.gmra.mxu0 %v1873
      %v2179 = vpop.f32.mrf.mxu0
      %v2180 = vadd.f32 %v2011, %v2179
      %v2181 = vpop.f32.mrf.mxu0
      %v2182 = vadd.f32 %v2013, %v2181
      %2183 = vmatmul.bf16.gmra.mxu0 %v1875
      %v2184 = vpop.f32.mrf.mxu0
      %v2185 = vadd.f32 %v2016, %v2184
      %v2186 = vpop.f32.mrf.mxu0
      %v2187 = vadd.f32 %v2018, %v2186
      %2188 = vmatmul.bf16.gmra.mxu0 %v1877
      %v2189 = vpop.f32.mrf.mxu0
      %v2190 = vadd.f32 %v2021, %v2189
      %v2191 = vpop.f32.mrf.mxu0
      %v2192 = vadd.f32 %v2023, %v2191
      %2193 = vmatmul.bf16.gmra.mxu0 %v1879
      %v2194 = vpop.f32.mrf.mxu0
      %v2195 = vadd.f32 %v2026, %v2194
      %v2196 = vpop.f32.mrf.mxu0
      %v2197 = vadd.f32 %v2028, %v2196
      %2198 = vmatmul.bf16.gmra.mxu0 %v1881
      %v2199 = vpop.f32.mrf.mxu0
      %v2200 = vadd.f32 %v2031, %v2199
      %v2201 = vpop.f32.mrf.mxu0
      %v2202 = vadd.f32 %v2033, %v2201
      %2203 = vmatmul.bf16.gmra.mxu0 %v1883
      %v2204 = vpop.f32.mrf.mxu0
      %v2205 = vadd.f32 %v2036, %v2204
      %v2206 = vpop.f32.mrf.mxu0
      %v2207 = vadd.f32 %v2038, %v2206
      %2208 = vmatmul.bf16.gmra.mxu0 %v1885
      %v2209 = vpop.f32.mrf.mxu0
      %v2210 = vadd.f32 %v2041, %v2209
      %v2211 = vpop.f32.mrf.mxu0
      %v2212 = vadd.f32 %v2043, %v2211
      %2213 = vmatmul.bf16.gmra.mxu0 %v1887
      %v2214 = vpop.f32.mrf.mxu0
      %v2215 = vadd.f32 %v2046, %v2214
      %v2216 = vpop.f32.mrf.mxu0
      %v2217 = vadd.f32 %v2048, %v2216
      %2218 = vmatmul.bf16.gmra.mxu0 %v1889
      %v2219 = vpop.f32.mrf.mxu0
      %v2220 = vadd.f32 %v2051, %v2219
      %v2221 = vpop.f32.mrf.mxu0
      %v2222 = vadd.f32 %v2053, %v2221
      %2223 = vmatmul.bf16.gmra.mxu0 %v1891
      %v2224 = vpop.f32.mrf.mxu0
      %v2225 = vadd.f32 %v2056, %v2224
      %v2226 = vpop.f32.mrf.mxu0
      %v2227 = vadd.f32 %v2058, %v2226
      %2228 = vmatmul.bf16.gmra.mxu0 %v1893
      %v2229 = vpop.f32.mrf.mxu0
      %v2230 = vadd.f32 %v2061, %v2229
      %v2231 = vpop.f32.mrf.mxu0
      %v2232 = vadd.f32 %v2063, %v2231
      %2233 = vmatmul.bf16.gmra.mxu0 %v1895
      %v2234 = vpop.f32.mrf.mxu0
      %v2235 = vadd.f32 %v2066, %v2234
      %v2236 = vpop.f32.mrf.mxu0
      %v2237 = vadd.f32 %v2068, %v2236
      %2238 = vdwg.mxu0
      %v2239 = vlaneseq
      %v2240 = vshrl.u32 %v2239, 7
      %v2241 = vadd.s32 %v2240, 8
      %v2242 = vadd.s32 %v2240, 16
      %v2243 = vadd.s32 %v2240, 24
      %vm2244 = vcmp.lt.s32.totalorder %v2240, 17
      %vm2245 = vcmp.lt.s32.totalorder %v2241, 17
      %vm2246 = vcmp.lt.s32.totalorder %v2242, 17
      %vm2247 = vcmp.lt.s32.totalorder %v2243, 17
      %v2248 = vsel %vm2244, 1, 0
      %v2249 = vsel %vm2245, 1, 0
      %v2250 = vsel %vm2246, 1, 0
      %v2251 = vsel %vm2247, 1, 0
      %vm2252 = vcmp.eq.s32.totalorder %v2248, 1
      %vm2253 = vcmp.eq.s32.totalorder %v2249, 1
      %vm2254 = vcmp.eq.s32.totalorder %v2250, 1
      %vm2255 = vcmp.eq.s32.totalorder %v2251, 1
      %v2256 = vsel %vm2252, %v2080, -inf
      %v2257 = vsel %vm2253, %v2082, -inf
      %v2258 = vsel %vm2254, %v2085, -inf
      %v2259 = vsel %vm2255, %v2087, -inf
      %v2260 = vsel %vm2252, %v2090, -inf
      %v2261 = vsel %vm2253, %v2092, -inf
      %v2262 = vsel %vm2254, %v2095, -inf
      %v2263 = vsel %vm2255, %v2097, -inf
      %v2264 = vsel %vm2252, %v2100, -inf
      %v2265 = vsel %vm2253, %v2102, -inf
      %v2266 = vsel %vm2254, %v2105, -inf
      %v2267 = vsel %vm2255, %v2107, -inf
      %v2268 = vsel %vm2252, %v2110, -inf
      %v2269 = vsel %vm2253, %v2112, -inf
      %v2270 = vsel %vm2254, %v2115, -inf
      %v2271 = vsel %vm2255, %v2117, -inf
      %v2272 = vsel %vm2252, %v2120, -inf
      %v2273 = vsel %vm2253, %v2122, -inf
      %v2274 = vsel %vm2254, %v2125, -inf
      %v2275 = vsel %vm2255, %v2127, -inf
      %v2276 = vsel %vm2252, %v2130, -inf
      %v2277 = vsel %vm2253, %v2132, -inf
      %v2278 = vsel %vm2254, %v2135, -inf
      %v2279 = vsel %vm2255, %v2137, -inf
      %v2280 = vsel %vm2252, %v2140, -inf
      %v2281 = vsel %vm2253, %v2142, -inf
      %v2282 = vsel %vm2254, %v2145, -inf
      %v2283 = vsel %vm2255, %v2147, -inf
      %v2284 = vsel %vm2252, %v2150, -inf
      %v2285 = vsel %vm2253, %v2152, -inf
      %v2286 = vsel %vm2254, %v2155, -inf
      %v2287 = vsel %vm2255, %v2157, -inf
      %v2288 = vsel %vm2252, %v2160, -inf
      %v2289 = vsel %vm2253, %v2162, -inf
      %v2290 = vsel %vm2254, %v2165, -inf
      %v2291 = vsel %vm2255, %v2167, -inf
      %v2292 = vsel %vm2252, %v2170, -inf
      %v2293 = vsel %vm2253, %v2172, -inf
      %v2294 = vsel %vm2254, %v2175, -inf
      %v2295 = vsel %vm2255, %v2177, -inf
      %v2296 = vsel %vm2252, %v2180, -inf
      %v2297 = vsel %vm2253, %v2182, -inf
      %v2298 = vsel %vm2254, %v2185, -inf
      %v2299 = vsel %vm2255, %v2187, -inf
      %v2300 = vsel %vm2252, %v2190, -inf
      %v2301 = vsel %vm2253, %v2192, -inf
      %v2302 = vsel %vm2254, %v2195, -inf
      %v2303 = vsel %vm2255, %v2197, -inf
      %v2304 = vsel %vm2252, %v2200, -inf
      %v2305 = vsel %vm2253, %v2202, -inf
      %v2306 = vsel %vm2254, %v2205, -inf
      %v2307 = vsel %vm2255, %v2207, -inf
      %v2308 = vsel %vm2252, %v2210, -inf
      %v2309 = vsel %vm2253, %v2212, -inf
      %v2310 = vsel %vm2254, %v2215, -inf
      %v2311 = vsel %vm2255, %v2217, -inf
      %v2312 = vsel %vm2252, %v2220, -inf
      %v2313 = vsel %vm2253, %v2222, -inf
      %v2314 = vsel %vm2254, %v2225, -inf
      %v2315 = vsel %vm2255, %v2227, -inf
      %v2316 = vsel %vm2252, %v2230, -inf
      %v2317 = vsel %vm2253, %v2232, -inf
      %v2318 = vsel %vm2254, %v2235, -inf
      %v2319 = vsel %vm2255, %v2237, -inf
      %v2320 = vmax.f32 %v2256, %v2257
      %v2321 = vmax.f32 %v2320, %v2258
      %v2322 = vmax.f32 %v2321, %v2259
      %v2323 = vrot.slane %v2322, 4
      %v2324 = vmax.f32 %v2322, %v2323
      %v2325 = vrot.slane %v2324, 2
      %v2326 = vmax.f32 %v2324, %v2325
      %v2327 = vrot.slane %v2326, 1
      %v2328 = vmax.f32 %v2326, %v2327
      %v2329 = vmax.f32 %v2260, %v2261
      %v2330 = vmax.f32 %v2329, %v2262
      %v2331 = vmax.f32 %v2330, %v2263
      %v2332 = vrot.slane %v2331, 4
      %v2333 = vmax.f32 %v2331, %v2332
      %v2334 = vrot.slane %v2333, 2
      %v2335 = vmax.f32 %v2333, %v2334
      %v2336 = vrot.slane %v2335, 1
      %v2337 = vmax.f32 %v2335, %v2336
      %v2338 = vmax.f32 %v2264, %v2265
      %v2339 = vmax.f32 %v2338, %v2266
      %v2340 = vmax.f32 %v2339, %v2267
      %v2341 = vrot.slane %v2340, 4
      %v2342 = vmax.f32 %v2340, %v2341
      %v2343 = vrot.slane %v2342, 2
      %v2344 = vmax.f32 %v2342, %v2343
      %v2345 = vrot.slane %v2344, 1
      %v2346 = vmax.f32 %v2344, %v2345
      %v2347 = vmax.f32 %v2268, %v2269
      %v2348 = vmax.f32 %v2347, %v2270
      %v2349 = vmax.f32 %v2348, %v2271
      %v2350 = vrot.slane %v2349, 4
      %v2351 = vmax.f32 %v2349, %v2350
      %v2352 = vrot.slane %v2351, 2
      %v2353 = vmax.f32 %v2351, %v2352
      %v2354 = vrot.slane %v2353, 1
      %v2355 = vmax.f32 %v2353, %v2354
      %v2356 = vmax.f32 %v2272, %v2273
      %v2357 = vmax.f32 %v2356, %v2274
      %v2358 = vmax.f32 %v2357, %v2275
      %v2359 = vrot.slane %v2358, 4
      %v2360 = vmax.f32 %v2358, %v2359
      %v2361 = vrot.slane %v2360, 2
      %v2362 = vmax.f32 %v2360, %v2361
      %v2363 = vrot.slane %v2362, 1
      %v2364 = vmax.f32 %v2362, %v2363
      %v2365 = vmax.f32 %v2276, %v2277
      %v2366 = vmax.f32 %v2365, %v2278
      %v2367 = vmax.f32 %v2366, %v2279
      %v2368 = vrot.slane %v2367, 4
      %v2369 = vmax.f32 %v2367, %v2368
      %v2370 = vrot.slane %v2369, 2
      %v2371 = vmax.f32 %v2369, %v2370
      %v2372 = vrot.slane %v2371, 1
      %v2373 = vmax.f32 %v2371, %v2372
      %v2374 = vmax.f32 %v2280, %v2281
      %v2375 = vmax.f32 %v2374, %v2282
      %v2376 = vmax.f32 %v2375, %v2283
      %v2377 = vrot.slane %v2376, 4
      %v2378 = vmax.f32 %v2376, %v2377
      %v2379 = vrot.slane %v2378, 2
      %v2380 = vmax.f32 %v2378, %v2379
      %v2381 = vrot.slane %v2380, 1
      %v2382 = vmax.f32 %v2380, %v2381
      %v2383 = vmax.f32 %v2284, %v2285
      %v2384 = vmax.f32 %v2383, %v2286
      %v2385 = vmax.f32 %v2384, %v2287
      %v2386 = vrot.slane %v2385, 4
      %v2387 = vmax.f32 %v2385, %v2386
      %v2388 = vrot.slane %v2387, 2
      %v2389 = vmax.f32 %v2387, %v2388
      %v2390 = vrot.slane %v2389, 1
      %v2391 = vmax.f32 %v2389, %v2390
      %v2392 = vmax.f32 %v2288, %v2289
      %v2393 = vmax.f32 %v2392, %v2290
      %v2394 = vmax.f32 %v2393, %v2291
      %v2395 = vrot.slane %v2394, 4
      %v2396 = vmax.f32 %v2394, %v2395
      %v2397 = vrot.slane %v2396, 2
      %v2398 = vmax.f32 %v2396, %v2397
      %v2399 = vrot.slane %v2398, 1
      %v2400 = vmax.f32 %v2398, %v2399
      %v2401 = vmax.f32 %v2292, %v2293
      %v2402 = vmax.f32 %v2401, %v2294
      %v2403 = vmax.f32 %v2402, %v2295
      %v2404 = vrot.slane %v2403, 4
      %v2405 = vmax.f32 %v2403, %v2404
      %v2406 = vrot.slane %v2405, 2
      %v2407 = vmax.f32 %v2405, %v2406
      %v2408 = vrot.slane %v2407, 1
      %v2409 = vmax.f32 %v2407, %v2408
      %v2410 = vmax.f32 %v2296, %v2297
      %v2411 = vmax.f32 %v2410, %v2298
      %v2412 = vmax.f32 %v2411, %v2299
      %v2413 = vrot.slane %v2412, 4
      %v2414 = vmax.f32 %v2412, %v2413
      %v2415 = vrot.slane %v2414, 2
      %v2416 = vmax.f32 %v2414, %v2415
      %v2417 = vrot.slane %v2416, 1
      %v2418 = vmax.f32 %v2416, %v2417
      %v2419 = vmax.f32 %v2300, %v2301
      %v2420 = vmax.f32 %v2419, %v2302
      %v2421 = vmax.f32 %v2420, %v2303
      %v2422 = vrot.slane %v2421, 4
      %v2423 = vmax.f32 %v2421, %v2422
      %v2424 = vrot.slane %v2423, 2
      %v2425 = vmax.f32 %v2423, %v2424
      %v2426 = vrot.slane %v2425, 1
      %v2427 = vmax.f32 %v2425, %v2426
      %v2428 = vmax.f32 %v2304, %v2305
      %v2429 = vmax.f32 %v2428, %v2306
      %v2430 = vmax.f32 %v2429, %v2307
      %v2431 = vrot.slane %v2430, 4
      %v2432 = vmax.f32 %v2430, %v2431
      %v2433 = vrot.slane %v2432, 2
      %v2434 = vmax.f32 %v2432, %v2433
      %v2435 = vrot.slane %v2434, 1
      %v2436 = vmax.f32 %v2434, %v2435
      %v2437 = vmax.f32 %v2308, %v2309
      %v2438 = vmax.f32 %v2437, %v2310
      %v2439 = vmax.f32 %v2438, %v2311
      %v2440 = vrot.slane %v2439, 4
      %v2441 = vmax.f32 %v2439, %v2440
      %v2442 = vrot.slane %v2441, 2
      %v2443 = vmax.f32 %v2441, %v2442
      %v2444 = vrot.slane %v2443, 1
      %v2445 = vmax.f32 %v2443, %v2444
      %v2446 = vmax.f32 %v2312, %v2313
      %v2447 = vmax.f32 %v2446, %v2314
      %v2448 = vmax.f32 %v2447, %v2315
      %v2449 = vrot.slane %v2448, 4
      %v2450 = vmax.f32 %v2448, %v2449
      %v2451 = vrot.slane %v2450, 2
      %v2452 = vmax.f32 %v2450, %v2451
      %v2453 = vrot.slane %v2452, 1
      %v2454 = vmax.f32 %v2452, %v2453
      %v2455 = vmax.f32 %v2316, %v2317
      %v2456 = vmax.f32 %v2455, %v2318
      %v2457 = vmax.f32 %v2456, %v2319
      %v2458 = vrot.slane %v2457, 4
      %v2459 = vmax.f32 %v2457, %v2458
      %v2460 = vrot.slane %v2459, 2
      %v2461 = vmax.f32 %v2459, %v2460
      %v2462 = vrot.slane %v2461, 1
      %v2463 = vmax.f32 %v2461, %v2462
      %v2464 = vld [vmem:[%s2] sm:$0x1]
      %v2466 = vperm.slane %v2464, 0
      %v2468 = vadd.f32 %v2328, %v2466
      %v2469 = vadd.f32 %v2337, %v2466
      %v2470 = vadd.f32 %v2346, %v2466
      %v2471 = vadd.f32 %v2355, %v2466
      %v2472 = vadd.f32 %v2364, %v2466
      %v2473 = vadd.f32 %v2373, %v2466
      %v2474 = vadd.f32 %v2382, %v2466
      %v2475 = vadd.f32 %v2391, %v2466
      %v2476 = vadd.f32 %v2400, %v2466
      %v2477 = vadd.f32 %v2409, %v2466
      %v2478 = vadd.f32 %v2418, %v2466
      %v2479 = vadd.f32 %v2427, %v2466
      %v2480 = vadd.f32 %v2436, %v2466
      %v2481 = vadd.f32 %v2445, %v2466
      %v2482 = vadd.f32 %v2454, %v2466
      %v2483 = vadd.f32 %v2463, %v2466
      %v2484 = vmax.f32 %v2468, 0.0
      %v2485 = vmax.f32 %v2469, 0.0
      %v2486 = vmax.f32 %v2470, 0.0
      %v2487 = vmax.f32 %v2471, 0.0
      %v2488 = vmax.f32 %v2472, 0.0
      %v2489 = vmax.f32 %v2473, 0.0
      %v2490 = vmax.f32 %v2474, 0.0
      %v2491 = vmax.f32 %v2475, 0.0
      %v2492 = vmax.f32 %v2476, 0.0
      %v2493 = vmax.f32 %v2477, 0.0
      %v2494 = vmax.f32 %v2478, 0.0
      %v2495 = vmax.f32 %v2479, 0.0
      %v2496 = vmax.f32 %v2480, 0.0
      %v2497 = vmax.f32 %v2481, 0.0
      %v2498 = vmax.f32 %v2482, 0.0
      %v2499 = vmax.f32 %v2483, 0.0
      %v2516 = vrot.slane %v2485, 7
      %vm2517 = vcmask 1041409
      %v2518 = vsel %vm2517, %v2516, %v2484
      %v2519 = vrot.slane %v2486, 6
      %vm2520 = vcmask 1042434
      %v2521 = vsel %vm2520, %v2519, %v2518
      %v2522 = vrot.slane %v2487, 5
      %vm2523 = vcmask 1043459
      %v2524 = vsel %vm2523, %v2522, %v2521
      %v2525 = vrot.slane %v2488, 4
      %vm2526 = vcmask 1044484
      %v2527 = vsel %vm2526, %v2525, %v2524
      %v2528 = vrot.slane %v2489, 3
      %vm2529 = vcmask 1045509
      %v2530 = vsel %vm2529, %v2528, %v2527
      %v2531 = vrot.slane %v2490, 2
      %vm2532 = vcmask 1046534
      %v2533 = vsel %vm2532, %v2531, %v2530
      %v2534 = vrot.slane %v2491, 1
      %vm2535 = vcmask 1047559
      %v2536 = vsel %vm2535, %v2534, %v2533
      %v2537 = vrot.slane %v2493, 7
      %v2538 = vsel %vm2517, %v2537, %v2492
      %v2539 = vrot.slane %v2494, 6
      %v2540 = vsel %vm2520, %v2539, %v2538
      %v2541 = vrot.slane %v2495, 5
      %v2542 = vsel %vm2523, %v2541, %v2540
      %v2543 = vrot.slane %v2496, 4
      %v2544 = vsel %vm2526, %v2543, %v2542
      %v2545 = vrot.slane %v2497, 3
      %v2546 = vsel %vm2529, %v2545, %v2544
      %v2547 = vrot.slane %v2498, 2
      %v2548 = vsel %vm2532, %v2547, %v2546
      %v2549 = vrot.slane %v2499, 1
      %v2550 = vsel %vm2535, %v2549, %v2548
      %2553 = vst [vmem:[%s175] sm:$0xff] %v2536
      %2554 = vst [vmem:[%s175 + $0x8] sm:$0xff] %v2550
      %s2555 = smul.u32 2, %s14
      %p2556 = scmp.lt.s32.totalorder %s2555, 7
      %s2557 = scalar_select %p2556, %s2555, 7
      %s2558 = smul.addr %s2557, 8
      %s2559 = scalar_lea.vmem %s3, %s2558
      // Predicated region
      $region33: #{cnn_forward_pallas.1} parent=31 // pred_check
        %p2560 = pneg %p100
      $region34: #{cnn_forward_pallas.1} parent=31 // pred_check_branch
        %2562 = sbr.rel (%p2560) target = $region36
      $region35: #{cnn_forward_pallas.1} parent=31 // pred_region
        %s2563 = smul.u32 2, %s14
      $region36: #{cnn_forward_pallas.1} parent=31 // pred_fallthru
        _
    $region32: #{cnn_forward_pallas.1} parent=5 // pred_fallthru
      _
    %p2564 = scmp.le.s32.totalorder 2, %s9
    // Predicated region
    $region37: #{cnn_forward_pallas.1} parent=5 // pred_check
      %p2565 = pneg %p2564
    $region38: #{cnn_forward_pallas.1} parent=5 // pred_check_branch
      %2567 = sbr.rel (%p2565) target = $region40
    $region39: #{cnn_forward_pallas.1} parent=5 // pred_region
      %s2568 = ssub.s32 %s9, 2
      // Predicated region
      $region41: #{cnn_forward_pallas.1} parent=39 // pred_check
        %p2569 = pneg %p106
      $region42: #{cnn_forward_pallas.1} parent=39 // pred_check_branch
        %2571 = sbr.rel (%p2569) target = $region44
      $region43: #{cnn_forward_pallas.1} parent=39 // pred_region
        %s2572 = smul.u32 2, %s15
        %p2573 = scmp.lt.s32.totalorder %s2572, 7
        %s2574 = scalar_select %p2573, %s2572, 7
        %s2575 = smul.addr %s2574, 8
        %s2576 = scalar_lea.vmem %s3, %s2575
      $region44: #{cnn_forward_pallas.1} parent=39 // pred_fallthru
        _
    $region40: #{cnn_forward_pallas.1} parent=5 // pred_fallthru
      _
  $region6: #{cnn_forward_pallas.1} parent=0 // loop_footer
    %s13 = sadd.s32 1, %s9
  $region7: #{cnn_forward_pallas.1} parent=0 // loop_footer_branch
    %8 = sbr.rel target = $region3
  $region8: #{cnn_forward_pallas.1} parent=0 // loop_exit
    _

</llo_original>
